<compile_context>
chip_gen: v7x
topology: tpu7x:2x2x1
jax: 0.10.0
libtpu: 0.0.40
codegen_flags: <defaults>
</compile_context>

<pallas_src>
import jax
import jax.numpy as jnp
from jax import lax
from jax.experimental import pallas as pl
from jax.experimental.pallas import tpu as pltpu


def _round_up(x, m):
    return (x + m - 1) // m * m


# --------------------------------------------------------------------------- #
# Kernel
# --------------------------------------------------------------------------- #
def qmlp_kernel(s_ref, t_ref,
                w1s_ref, w1t_ref, b1_ref,
                w2_ref, b2_ref,
                w3_ref, b3_ref,
                w4_ref, b4_ref,
                w5_ref, b5_ref,
                w6_ref, b6_ref,
                out_ref):
    """Fused 6-layer MLP over one (tm, .) batch tile; weights are full VMEM blocks."""

    def relu_bf16(y_f32):
        # Downcast at the ReLU: downstream matmuls consume bf16 anyway and this
        # halves the live inter-layer activation footprint.
        return jnp.maximum(y_f32, 0.0).astype(jnp.bfloat16)

    def lin(h_bf16, w_ref, b_ref):
        # bf16 operands into the MXU, f32 accumulation, f32 bias.
        return jnp.dot(h_bf16, w_ref[...],
                       preferred_element_type=jnp.float32) + b_ref[...]

    # Layer 1: split-K over (state || theorem) -- no concat anywhere; inputs are bf16.
    h = relu_bf16(
        jnp.dot(s_ref[...], w1s_ref[...], preferred_element_type=jnp.float32)
        + jnp.dot(t_ref[...], w1t_ref[...], preferred_element_type=jnp.float32)
        + b1_ref[...])
    h = relu_bf16(lin(h, w2_ref, b2_ref))
    h = relu_bf16(lin(h, w3_ref, b3_ref))
    h = relu_bf16(lin(h, w4_ref, b4_ref))
    h = relu_bf16(lin(h, w5_ref, b5_ref))

    # Final layer, transposed: (1, K5) contracted against (tm, K5) -> (1, tm), so the
    # Q values pack lane-dense along the batch dimension (tiny, unmasked writeback).
    q = lax.dot_general(
        w6_ref[...], h,
        dimension_numbers=(((1,), (1,)), ((), ())),
        preferred_element_type=jnp.float32) + b6_ref[...]
    out_ref[...] = q


# --------------------------------------------------------------------------- #
# Parameter packing (pad + cast once, reuse across many forward calls)
# --------------------------------------------------------------------------- #
def pack_q_params(params, obs_size, thm_size):
    """Pad/cast the 6 (W, b) pairs into the kernel layout.

    params: list of 6 (W, b); W: (in, out) f32 (PyTorch weight transposed),
            b: (1, out) f32.
    Returns flat tuple (w1s, w1t, b1, w2, b2, w3, b3, w4, b4, w5, b5, w6row, b6):
      * weights bf16; hidden (output) dims zero-padded to multiples of 128 so every
        inner GEMM output is lane-dense; layer-1 input rows are NOT padded (K=96/32).
      * final layer stored as a transposed row (1, K5_pad) so the kernel can emit a
        lane-dense (1, tm) Q block.
      * biases f32, zero-padded on the lane dim. Exact (ReLU(0)=0, zero weight rows).
    """
    assert len(params) == 6
    assert params[0][0].shape[0] == obs_size + thm_size

    def pad_w(w, in_pad, out_pad):
        w = w.astype(jnp.float32)
        return jnp.pad(
            w, ((0, in_pad - w.shape[0]), (0, out_pad - w.shape[1]))
        ).astype(jnp.bfloat16)

    def pad_b(b, out_pad):
        b = b.astype(jnp.float32)
        return jnp.pad(b, ((0, 0), (0, out_pad - b.shape[1])))

    hid_pad = [_round_up(w.shape[1], 128) for (w, _) in params[:5]]

    w1, b1 = params[0]
    packed = [
        pad_w(w1[:obs_size], obs_size, hid_pad[0]),   # (obs, 2D)  state rows of W1
        pad_w(w1[obs_size:], thm_size, hid_pad[0]),   # (thm, 2D)  theorem rows of W1
        pad_b(b1, hid_pad[0]),
    ]
    for layer in range(1, 5):
        w, b = params[layer]
        packed.append(pad_w(w, hid_pad[layer - 1], hid_pad[layer]))
        packed.append(pad_b(b, hid_pad[layer]))

    w6, b6 = params[5]                                 # (K5, 1), (1, 1)
    packed.append(pad_w(w6.T, 1, hid_pad[4]))          # (1, K5_pad) bf16 row
    packed.append(b6.astype(jnp.float32))              # (1, 1) f32 scalar bias
    return tuple(packed)


# --------------------------------------------------------------------------- #
# Batch tiling
# --------------------------------------------------------------------------- #
def _choose_batch_tiling(B, tm_req):
    """Pick (tile_rows, num_tiles).

    * Small batches use a single tile whose blocks equal the full arrays.
    * Otherwise tile_rows is a multiple of 128 (so the lane-dense (1, tm) output
      block tiles legally) and the tile count is even so v7x's two TensorCores
      stay balanced; harmless on single-core v5e/v6e.
    """
    if B <= 128:
        return max(16, _round_up(B, 16)), 1            # bf16 sublane minimum is 16
    tm_req = min(max(_round_up(tm_req, 128), 128), 1024)
    n = -(-B // tm_req)
    if n == 1:
        n = 2
    if n % 2:
        n += 1
    tm = max(128, _round_up(-(-B // n), 128))
    return tm, n


# --------------------------------------------------------------------------- #
# Wrappers
# --------------------------------------------------------------------------- #
def q_meta_controller_forward_batch(state_batch, theorem_batch, packed, *, tm=512):
    """Score B already-encoded (state, theorem) rows; returns (B, 1) f32 Q values."""
    B, obs = state_batch.shape
    Bt, thm = theorem_batch.shape
    assert B == Bt
    assert packed[0].shape[0] == obs and packed[1].shape[0] == thm

    tm_eff, n_tiles = _choose_batch_tiling(B, tm)
    b_pad = tm_eff * n_tiles

    # Batch-only padding fused with the bf16 downcast -- no padded-feature f32 copy.
    s = jnp.pad(state_batch.astype(jnp.bfloat16), ((0, b_pad - B), (0, 0)))
    t = jnp.pad(theorem_batch.astype(jnp.bfloat16), ((0, b_pad - B), (0, 0)))

    batch_map = lambda i: (i, 0)
    # Constant index map -> weights/biases stay VMEM-resident across all grid steps.
    resident = lambda a: pl.BlockSpec(a.shape, lambda i: (0, 0))

    out = pl.pallas_call(
        qmlp_kernel,
        out_shape=jax.ShapeDtypeStruct((1, b_pad), jnp.float32),
        grid=(n_tiles,),
        in_specs=[pl.BlockSpec((tm_eff, obs), batch_map),
                  pl.BlockSpec((tm_eff, thm), batch_map)]
                 + [resident(a) for a in packed],
        out_specs=pl.BlockSpec((1, tm_eff), lambda i: (0, i)),
        compiler_params=pltpu.CompilerParams(
            dimension_semantics=("parallel",)),
    )(s, t, *packed)

    # NOTE: out[0, B:] holds Q values of zero-padded rows (biases through ReLU);
    # never reduce over the padded region -- slice first.
    return out[0, :B].reshape(B, 1)


def q_meta_controller_forward(state_tensor, theorem_tensor, packed):
    """Mirrors QMetaController.forward for one encoded (state, theorem) pair → (1, 1)."""
    return q_meta_controller_forward_batch(
        state_tensor[None, :], theorem_tensor[None, :], packed, tm=16)


# --------------------------------------------------------------------------- #
# Init + pure-JAX references
# --------------------------------------------------------------------------- #
def init_q_layers_params(key, input_size):
    """Deterministic init matching the q_layers architecture (PyTorch-style uniform)."""
    dims = [
        input_size,
        2 * input_size,
        int(1.4 * input_size),
        input_size,
        int(0.5 * input_size),
        int(1.0 / 16 * input_size),
        1,
    ]
    params = []
    for i in range(len(dims) - 1):
        fan_in, fan_out = dims[i], dims[i + 1]
        key, kw, kb = jax.random.split(key, 3)
        bound = 1.0 / jnp.sqrt(jnp.float32(fan_in))
        # stored as (in, out) = PyTorch weight (out, in) transposed
        w = jax.random.uniform(kw, (fan_in, fan_out), jnp.float32, -bound, bound)
        b = jax.random.uniform(kb, (1, fan_out), jnp.float32, -bound, bound)
        params.append((w, b))
    return params


def reference_forward_f32(state_b, theorem_b, params):
    """Full-precision reference (original module semantics, batched)."""
    h = jnp.concatenate([state_b, theorem_b], axis=1).astype(jnp.float32)
    for i, (w, b) in enumerate(params):
        h = h @ w + b
        if i < len(params) - 1:
            h = jnp.maximum(h, 0.0)
    return h


def reference_forward_bf16(state_b, theorem_b, params, obs_size):
    """Reference that mimics the kernel's numerics (bf16 operands, f32 accumulate)."""
    w1, b1 = params[0]
    h = (jnp.dot(state_b.astype(jnp.bfloat16), w1[:obs_size].astype(jnp.bfloat16),
                 preferred_element_type=jnp.float32)
         + jnp.dot(theorem_b.astype(jnp.bfloat16), w1[obs_size:].astype(jnp.bfloat16),
                   preferred_element_type=jnp.float32)
         + b1)
    h = jnp.maximum(h, 0.0).astype(jnp.bfloat16)
    for i in range(1, len(params)):
        w, b = params[i]
        y = jnp.dot(h, w.astype(jnp.bfloat16),
                    preferred_element_type=jnp.float32) + b
        h = jnp.maximum(y, 0.0).astype(jnp.bfloat16) if i < len(params) - 1 else y
    return h


# --------------------------------------------------------------------------- #
# Demo / self-check
# --------------------------------------------------------------------------- #
if __name__ == "__main__":
    observation_tensor_size = 96
    theorem_embedding_size = 32
    input_size = observation_tensor_size + theorem_embedding_size  # 128
    num_candidates = 300  # "score many candidate theorems" -> 2 tiles of 256 rows

    key = jax.random.PRNGKey(0)
    k_state, k_thm, k_params = jax.random.split(key, 3)

    # Stand-ins for encoder.encode_observation(state).squeeze() / encode_theorem(theorem).
    state_batch = jax.random.normal(
        k_state, (num_candidates, observation_tensor_size), jnp.float32)
    theorem_batch = jax.random.normal(
        k_thm, (num_candidates, theorem_embedding_size), jnp.float32)

    params = init_q_layers_params(k_params, input_size)
    packed = pack_q_params(params, observation_tensor_size, theorem_embedding_size)

    # Batched path (jit fuses the single pad+cast of the activations).
    score = jax.jit(lambda s, t: q_meta_controller_forward_batch(s, t, packed))
    q_batch = jax.block_until_ready(score(state_batch, theorem_batch))
    assert q_batch.shape == (num_candidates, 1)

    # Exact-ish check vs a reference with matching (bf16-weight/activation) numerics.
    q_ref_bf16 = reference_forward_bf16(
        state_batch, theorem_batch, params, observation_tensor_size)
    assert jnp.allclose(q_batch, q_ref_bf16, atol=1e-3, rtol=1e-3), \
        float(jnp.max(jnp.abs(q_batch - q_ref_bf16)))

    # Loose sanity check vs the full-f32 reference (bf16 rounding only).
    q_ref_f32 = reference_forward_f32(state_batch, theorem_batch, params)
    assert jnp.allclose(q_batch, q_ref_f32, atol=5e-2, rtol=5e-2), \
        float(jnp.max(jnp.abs(q_batch - q_ref_f32)))

    # Single (state, theorem) path -- original module's forward shape (1, 1).
    q1 = jax.block_until_ready(
        q_meta_controller_forward(state_batch[0], theorem_batch[0], packed))
    assert q1.shape == (1, 1)
    assert jnp.allclose(q1, q_batch[0:1], atol=1e-3, rtol=1e-3)

    print("KERNEL_OK")
</pallas_src>

<mosaic_0001>
module attributes {stable_mosaic.version = 11 : i64} {
  func.func @qmlp_kernel(%arg0: i32, %arg1: memref<256x96xbf16, #tpu.memory_space<vmem>>, %arg2: memref<256x32xbf16, #tpu.memory_space<vmem>>, %arg3: memref<96x256xbf16, #tpu.memory_space<vmem>>, %arg4: memref<32x256xbf16, #tpu.memory_space<vmem>>, %arg5: memref<1x256xf32, #tpu.memory_space<vmem>>, %arg6: memref<256x256xbf16, #tpu.memory_space<vmem>>, %arg7: memref<1x256xf32, #tpu.memory_space<vmem>>, %arg8: memref<256x128xbf16, #tpu.memory_space<vmem>>, %arg9: memref<1x128xf32, #tpu.memory_space<vmem>>, %arg10: memref<128x128xbf16, #tpu.memory_space<vmem>>, %arg11: memref<1x128xf32, #tpu.memory_space<vmem>>, %arg12: memref<128x128xbf16, #tpu.memory_space<vmem>>, %arg13: memref<1x128xf32, #tpu.memory_space<vmem>>, %arg14: memref<1x128xbf16, #tpu.memory_space<vmem>>, %arg15: memref<1x1xf32, #tpu.memory_space<vmem>>, %arg16: memref<1x256xf32, #tpu.memory_space<vmem>>) attributes {dimension_semantics = [#tpu.dimension_semantics<parallel>], iteration_bounds = array<i64: 2>, scalar_prefetch = 0 : i64, scratch_operands = 0 : i64, tpu.core_type = #tpu.core_type<tc>, window_params = [{transform_indices = @transform_0, window_bounds = array<i64: 256, 96>}, {transform_indices = @transform_1, window_bounds = array<i64: 256, 32>}, {pipeline_mode = #tpu.pipeline_mode<synchronous>, transform_indices = @transform_2, window_bounds = array<i64: 96, 256>}, {pipeline_mode = #tpu.pipeline_mode<synchronous>, transform_indices = @transform_3, window_bounds = array<i64: 32, 256>}, {pipeline_mode = #tpu.pipeline_mode<synchronous>, transform_indices = @transform_4, window_bounds = array<i64: 1, 256>}, {pipeline_mode = #tpu.pipeline_mode<synchronous>, transform_indices = @transform_5, window_bounds = array<i64: 256, 256>}, {pipeline_mode = #tpu.pipeline_mode<synchronous>, transform_indices = @transform_6, window_bounds = array<i64: 1, 256>}, {pipeline_mode = #tpu.pipeline_mode<synchronous>, transform_indices = @transform_7, window_bounds = array<i64: 256, 128>}, {pipeline_mode = #tpu.pipeline_mode<synchronous>, transform_indices = @transform_8, window_bounds = array<i64: 1, 128>}, {pipeline_mode = #tpu.pipeline_mode<synchronous>, transform_indices = @transform_9, window_bounds = array<i64: 128, 128>}, {pipeline_mode = #tpu.pipeline_mode<synchronous>, transform_indices = @transform_10, window_bounds = array<i64: 1, 128>}, {pipeline_mode = #tpu.pipeline_mode<synchronous>, transform_indices = @transform_11, window_bounds = array<i64: 128, 128>}, {pipeline_mode = #tpu.pipeline_mode<synchronous>, transform_indices = @transform_12, window_bounds = array<i64: 1, 128>}, {pipeline_mode = #tpu.pipeline_mode<synchronous>, transform_indices = @transform_13, window_bounds = array<i64: 1, 128>}, {pipeline_mode = #tpu.pipeline_mode<synchronous>, transform_indices = @transform_14, window_bounds = array<i64: 1, 1>}, {transform_indices = @transform_15, window_bounds = array<i64: 1, 256>}]} {
    %c0 = arith.constant 0 : index
    %c0_0 = arith.constant 0 : index
    %0 = vector.load %arg1[%c0, %c0_0] : memref<256x96xbf16, #tpu.memory_space<vmem>>, vector<256x96xbf16>
    %c0_1 = arith.constant 0 : index
    %c0_2 = arith.constant 0 : index
    %1 = vector.load %arg3[%c0_1, %c0_2] : memref<96x256xbf16, #tpu.memory_space<vmem>>, vector<96x256xbf16>
    %cst = arith.constant dense<0.000000e+00> : vector<256x256xf32>
    %2 = tpu.matmul %0, %1, %cst {dimension_numbers = #tpu.dot_dimension_numbers<[1], [0], [0], [1], [0, 0, 1, 1], [], []>} : vector<256x96xbf16>, vector<96x256xbf16>, vector<256x256xf32> -> vector<256x256xf32>
    %c0_3 = arith.constant 0 : index
    %c0_4 = arith.constant 0 : index
    %3 = vector.load %arg2[%c0_3, %c0_4] : memref<256x32xbf16, #tpu.memory_space<vmem>>, vector<256x32xbf16>
    %c0_5 = arith.constant 0 : index
    %c0_6 = arith.constant 0 : index
    %4 = vector.load %arg4[%c0_5, %c0_6] : memref<32x256xbf16, #tpu.memory_space<vmem>>, vector<32x256xbf16>
    %cst_7 = arith.constant dense<0.000000e+00> : vector<256x256xf32>
    %5 = tpu.matmul %3, %4, %cst_7 {dimension_numbers = #tpu.dot_dimension_numbers<[1], [0], [0], [1], [0, 0, 1, 1], [], []>} : vector<256x32xbf16>, vector<32x256xbf16>, vector<256x256xf32> -> vector<256x256xf32>
    %6 = arith.addf %2, %5 : vector<256x256xf32>
    %c0_8 = arith.constant 0 : index
    %c0_9 = arith.constant 0 : index
    %7 = vector.load %arg5[%c0_8, %c0_9] : memref<1x256xf32, #tpu.memory_space<vmem>>, vector<1x256xf32>
    %8 = vector.broadcast %7 : vector<1x256xf32> to vector<256x256xf32>
    %9 = arith.addf %6, %8 : vector<256x256xf32>
    %cst_10 = arith.constant 0.000000e+00 : f32
    %10 = vector.broadcast %cst_10 : f32 to vector<256x256xf32>
    %11 = arith.maximumf %9, %10 : vector<256x256xf32>
    %12 = arith.truncf %11 : vector<256x256xf32> to vector<256x256xbf16>
    %c0_11 = arith.constant 0 : index
    %c0_12 = arith.constant 0 : index
    %13 = vector.load %arg6[%c0_11, %c0_12] : memref<256x256xbf16, #tpu.memory_space<vmem>>, vector<256x256xbf16>
    %cst_13 = arith.constant dense<0.000000e+00> : vector<256x256xf32>
    %14 = tpu.matmul %12, %13, %cst_13 {dimension_numbers = #tpu.dot_dimension_numbers<[1], [0], [0], [1], [0, 0, 1, 1], [], []>} : vector<256x256xbf16>, vector<256x256xbf16>, vector<256x256xf32> -> vector<256x256xf32>
    %c0_14 = arith.constant 0 : index
    %c0_15 = arith.constant 0 : index
    %15 = vector.load %arg7[%c0_14, %c0_15] : memref<1x256xf32, #tpu.memory_space<vmem>>, vector<1x256xf32>
    %16 = vector.broadcast %15 : vector<1x256xf32> to vector<256x256xf32>
    %17 = arith.addf %14, %16 : vector<256x256xf32>
    %cst_16 = arith.constant 0.000000e+00 : f32
    %18 = vector.broadcast %cst_16 : f32 to vector<256x256xf32>
    %19 = arith.maximumf %17, %18 : vector<256x256xf32>
    %20 = arith.truncf %19 : vector<256x256xf32> to vector<256x256xbf16>
    %c0_17 = arith.constant 0 : index
    %c0_18 = arith.constant 0 : index
    %21 = vector.load %arg8[%c0_17, %c0_18] : memref<256x128xbf16, #tpu.memory_space<vmem>>, vector<256x128xbf16>
    %cst_19 = arith.constant dense<0.000000e+00> : vector<256x128xf32>
    %22 = tpu.matmul %20, %21, %cst_19 {dimension_numbers = #tpu.dot_dimension_numbers<[1], [0], [0], [1], [0, 0, 1, 1], [], []>} : vector<256x256xbf16>, vector<256x128xbf16>, vector<256x128xf32> -> vector<256x128xf32>
    %c0_20 = arith.constant 0 : index
    %c0_21 = arith.constant 0 : index
    %23 = vector.load %arg9[%c0_20, %c0_21] : memref<1x128xf32, #tpu.memory_space<vmem>>, vector<1x128xf32>
    %24 = vector.broadcast %23 : vector<1x128xf32> to vector<256x128xf32>
    %25 = arith.addf %22, %24 : vector<256x128xf32>
    %cst_22 = arith.constant 0.000000e+00 : f32
    %26 = vector.broadcast %cst_22 : f32 to vector<256x128xf32>
    %27 = arith.maximumf %25, %26 : vector<256x128xf32>
    %28 = arith.truncf %27 : vector<256x128xf32> to vector<256x128xbf16>
    %c0_23 = arith.constant 0 : index
    %c0_24 = arith.constant 0 : index
    %29 = vector.load %arg10[%c0_23, %c0_24] : memref<128x128xbf16, #tpu.memory_space<vmem>>, vector<128x128xbf16>
    %cst_25 = arith.constant dense<0.000000e+00> : vector<256x128xf32>
    %30 = tpu.matmul %28, %29, %cst_25 {dimension_numbers = #tpu.dot_dimension_numbers<[1], [0], [0], [1], [0, 0, 1, 1], [], []>} : vector<256x128xbf16>, vector<128x128xbf16>, vector<256x128xf32> -> vector<256x128xf32>
    %c0_26 = arith.constant 0 : index
    %c0_27 = arith.constant 0 : index
    %31 = vector.load %arg11[%c0_26, %c0_27] : memref<1x128xf32, #tpu.memory_space<vmem>>, vector<1x128xf32>
    %32 = vector.broadcast %31 : vector<1x128xf32> to vector<256x128xf32>
    %33 = arith.addf %30, %32 : vector<256x128xf32>
    %cst_28 = arith.constant 0.000000e+00 : f32
    %34 = vector.broadcast %cst_28 : f32 to vector<256x128xf32>
    %35 = arith.maximumf %33, %34 : vector<256x128xf32>
    %36 = arith.truncf %35 : vector<256x128xf32> to vector<256x128xbf16>
    %c0_29 = arith.constant 0 : index
    %c0_30 = arith.constant 0 : index
    %37 = vector.load %arg12[%c0_29, %c0_30] : memref<128x128xbf16, #tpu.memory_space<vmem>>, vector<128x128xbf16>
    %cst_31 = arith.constant dense<0.000000e+00> : vector<256x128xf32>
    %38 = tpu.matmul %36, %37, %cst_31 {dimension_numbers = #tpu.dot_dimension_numbers<[1], [0], [0], [1], [0, 0, 1, 1], [], []>} : vector<256x128xbf16>, vector<128x128xbf16>, vector<256x128xf32> -> vector<256x128xf32>
    %c0_32 = arith.constant 0 : index
    %c0_33 = arith.constant 0 : index
    %39 = vector.load %arg13[%c0_32, %c0_33] : memref<1x128xf32, #tpu.memory_space<vmem>>, vector<1x128xf32>
    %40 = vector.broadcast %39 : vector<1x128xf32> to vector<256x128xf32>
    %41 = arith.addf %38, %40 : vector<256x128xf32>
    %cst_34 = arith.constant 0.000000e+00 : f32
    %42 = vector.broadcast %cst_34 : f32 to vector<256x128xf32>
    %43 = arith.maximumf %41, %42 : vector<256x128xf32>
    %44 = arith.truncf %43 : vector<256x128xf32> to vector<256x128xbf16>
    %c0_35 = arith.constant 0 : index
    %c0_36 = arith.constant 0 : index
    %45 = vector.load %arg14[%c0_35, %c0_36] : memref<1x128xbf16, #tpu.memory_space<vmem>>, vector<1x128xbf16>
    %cst_37 = arith.constant dense<0.000000e+00> : vector<1x256xf32>
    %46 = tpu.matmul %45, %44, %cst_37 {dimension_numbers = #tpu.dot_dimension_numbers<[1], [1], [0], [0], [0, 0, 1, 0], [], []>} : vector<1x128xbf16>, vector<256x128xbf16>, vector<1x256xf32> -> vector<1x256xf32>
    %c0_38 = arith.constant 0 : index
    %c0_39 = arith.constant 0 : index
    %47 = vector.load %arg15[%c0_38, %c0_39] : memref<1x1xf32, #tpu.memory_space<vmem>>, vector<1x1xf32>
    %48 = vector.broadcast %47 : vector<1x1xf32> to vector<1x256xf32>
    %49 = arith.addf %46, %48 : vector<1x256xf32>
    %c0_40 = arith.constant 0 : index
    %c0_41 = arith.constant 0 : index
    %50 = vector.load %arg16[%c0_40, %c0_41] : memref<1x256xf32, #tpu.memory_space<vmem>>, vector<1x256xf32>
    tpu.vector_store %arg16[%c0_40, %c0_41], %49 {strides = array<i32>} : memref<1x256xf32, #tpu.memory_space<vmem>>, vector<1x256xf32>,
    return
  }
  func.func @transform_0(%arg0: i32) -> (i32, i32) {
    %c0_i32 = arith.constant 0 : i32
    %c0_i32_0 = arith.constant 0 : i32
    return %arg0, %c0_i32 : i32, i32
  }
  func.func @transform_1(%arg0: i32) -> (i32, i32) {
    %c0_i32 = arith.constant 0 : i32
    %c0_i32_0 = arith.constant 0 : i32
    return %arg0, %c0_i32 : i32, i32
  }
  func.func @transform_2(%arg0: i32) -> (i32, i32) {
    %c0_i32 = arith.constant 0 : i32
    %c0_i32_0 = arith.constant 0 : i32
    %c0_i32_1 = arith.constant 0 : i32
    return %c0_i32, %c0_i32_0 : i32, i32
  }
  func.func @transform_3(%arg0: i32) -> (i32, i32) {
    %c0_i32 = arith.constant 0 : i32
    %c0_i32_0 = arith.constant 0 : i32
    %c0_i32_1 = arith.constant 0 : i32
    return %c0_i32, %c0_i32_0 : i32, i32
  }
  func.func @transform_4(%arg0: i32) -> (i32, i32) {
    %c0_i32 = arith.constant 0 : i32
    %c0_i32_0 = arith.constant 0 : i32
    %c0_i32_1 = arith.constant 0 : i32
    return %c0_i32, %c0_i32_0 : i32, i32
  }
  func.func @transform_5(%arg0: i32) -> (i32, i32) {
    %c0_i32 = arith.constant 0 : i32
    %c0_i32_0 = arith.constant 0 : i32
    %c0_i32_1 = arith.constant 0 : i32
    return %c0_i32, %c0_i32_0 : i32, i32
  }
  func.func @transform_6(%arg0: i32) -> (i32, i32) {
    %c0_i32 = arith.constant 0 : i32
    %c0_i32_0 = arith.constant 0 : i32
    %c0_i32_1 = arith.constant 0 : i32
    return %c0_i32, %c0_i32_0 : i32, i32
  }
  func.func @transform_7(%arg0: i32) -> (i32, i32) {
    %c0_i32 = arith.constant 0 : i32
    %c0_i32_0 = arith.constant 0 : i32
    %c0_i32_1 = arith.constant 0 : i32
    return %c0_i32, %c0_i32_0 : i32, i32
  }
  func.func @transform_8(%arg0: i32) -> (i32, i32) {
    %c0_i32 = arith.constant 0 : i32
    %c0_i32_0 = arith.constant 0 : i32
    %c0_i32_1 = arith.constant 0 : i32
    return %c0_i32, %c0_i32_0 : i32, i32
  }
  func.func @transform_9(%arg0: i32) -> (i32, i32) {
    %c0_i32 = arith.constant 0 : i32
    %c0_i32_0 = arith.constant 0 : i32
    %c0_i32_1 = arith.constant 0 : i32
    return %c0_i32, %c0_i32_0 : i32, i32
  }
  func.func @transform_10(%arg0: i32) -> (i32, i32) {
    %c0_i32 = arith.constant 0 : i32
    %c0_i32_0 = arith.constant 0 : i32
    %c0_i32_1 = arith.constant 0 : i32
    return %c0_i32, %c0_i32_0 : i32, i32
  }
  func.func @transform_11(%arg0: i32) -> (i32, i32) {
    %c0_i32 = arith.constant 0 : i32
    %c0_i32_0 = arith.constant 0 : i32
    %c0_i32_1 = arith.constant 0 : i32
    return %c0_i32, %c0_i32_0 : i32, i32
  }
  func.func @transform_12(%arg0: i32) -> (i32, i32) {
    %c0_i32 = arith.constant 0 : i32
    %c0_i32_0 = arith.constant 0 : i32
    %c0_i32_1 = arith.constant 0 : i32
    return %c0_i32, %c0_i32_0 : i32, i32
  }
  func.func @transform_13(%arg0: i32) -> (i32, i32) {
    %c0_i32 = arith.constant 0 : i32
    %c0_i32_0 = arith.constant 0 : i32
    %c0_i32_1 = arith.constant 0 : i32
    return %c0_i32, %c0_i32_0 : i32, i32
  }
  func.func @transform_14(%arg0: i32) -> (i32, i32) {
    %c0_i32 = arith.constant 0 : i32
    %c0_i32_0 = arith.constant 0 : i32
    %c0_i32_1 = arith.constant 0 : i32
    return %c0_i32, %c0_i32_0 : i32, i32
  }
  func.func @transform_15(%arg0: i32) -> (i32, i32) {
    %c0_i32 = arith.constant 0 : i32
    %c0_i32_0 = arith.constant 0 : i32
    return %c0_i32, %arg0 : i32, i32
  }
}

</mosaic_0001>

<llo_original>
// kernel: _lambda_.1
$region0: #{_lambda_.1}
  #allocation0 [shape = 'u32[]', space=smem, size = 0x4, offset = 0x4, fixed_abs, tag = 'smem constant byte address 0x4 - core index']
  #allocation1 [shape = 'u32[144,128]{1,0:T(1,128)}', space=vmem, size = 0x12000, scoped, tag = 'internal scratch']
  #allocation2 [shape = 'f32[1,1]{1,0:T(1,128)S(1)}', space=vmem, size = 0x200, scoped, tag = 'scoped memory for _lambda_.1']
  %s0 = inlined_call_operand.vmem [shape: bf16[512,96], index: 0, kind: input, shape index: {}]
  %s1 = inlined_call_operand.vmem [shape: bf16[512,32], index: 1, kind: input, shape index: {}]
  %s2 = inlined_call_operand.vmem [shape: bf16[96,256], index: 2, kind: input, shape index: {}]
  %s3 = inlined_call_operand.vmem [shape: bf16[32,256], index: 3, kind: input, shape index: {}]
  %s4 = inlined_call_operand.vmem [shape: f32[1,256], index: 4, kind: input, shape index: {}]
  %s5 = inlined_call_operand.vmem [shape: bf16[256,256], index: 5, kind: input, shape index: {}]
  %s6 = inlined_call_operand.vmem [shape: f32[1,256], index: 6, kind: input, shape index: {}]
  %s7 = inlined_call_operand.vmem [shape: bf16[256,128], index: 7, kind: input, shape index: {}]
  %s8 = inlined_call_operand.vmem [shape: f32[1,128], index: 8, kind: input, shape index: {}]
  %s9 = inlined_call_operand.vmem [shape: bf16[128,128], index: 9, kind: input, shape index: {}]
  %s10 = inlined_call_operand.vmem [shape: f32[1,128], index: 10, kind: input, shape index: {}]
  %s11 = inlined_call_operand.vmem [shape: bf16[128,128], index: 11, kind: input, shape index: {}]
  %s12 = inlined_call_operand.vmem [shape: f32[1,128], index: 12, kind: input, shape index: {}]
  %s13 = inlined_call_operand.vmem [shape: bf16[1,128], index: 13, kind: input, shape index: {}]
  %s14 = inlined_call_operand.<no memory space> [shape: f32[1,1], index: 14, kind: input, shape index: {}]
  %s15 = inlined_call_operand.vmem [shape: f32[1,512], index: 15, kind: output, shape index: {}]
  %s16 = sld [smem:[#allocation0]]
  $region93: #{_lambda_.1} parent=0
    _
  %s18 = ssub.s32 1, %s16
  %s19 = scalar_select 0, %s18, %s16
  %v20 = vstv %s14
  %21 = vst [vmem:[#allocation2] sm:$0x1] %v20
  loop: start=0, step=1, limit=4
  $region2: #{_lambda_.1} parent=0 // loop_pre_header
    _
  $region3: #{_lambda_.1} parent=0 // loop_header
    %s23 = sphi 0, %s27
    %p24 = scmp.ge.s32.totalorder %s23, 4
    %s33 = sphi 0, %s35
    %s36 = sphi 0, %s33
    %s37 = sphi 0, %s36
    %s53 = sphi 0, %s37
    %s59 = sphi 0, %s61
    %s62 = sphi 0, %s59
    %s63 = sphi 0, %s62
    %s79 = sphi 0, %s63
    %s83 = sphi 0, %s83
    %s85 = sphi 0, %s83
    %s86 = sphi 0, %s85
    %s100 = sphi 0, %s86
    %s104 = sphi 0, %s104
    %s106 = sphi 0, %s104
    %s107 = sphi 0, %s106
    %s121 = sphi 0, %s107
    %s125 = sphi 0, %s125
    %s127 = sphi 0, %s125
    %s128 = sphi 0, %s127
    %s142 = sphi 0, %s128
    %s146 = sphi 0, %s146
    %s148 = sphi 0, %s146
    %s149 = sphi 0, %s148
    %s163 = sphi 0, %s149
    %s167 = sphi 0, %s167
    %s169 = sphi 0, %s167
    %s170 = sphi 0, %s169
    %s184 = sphi 0, %s170
    %s188 = sphi 0, %s188
    %s190 = sphi 0, %s188
    %s191 = sphi 0, %s190
    %s205 = sphi 0, %s191
    %s209 = sphi 0, %s209
    %s211 = sphi 0, %s209
    %s212 = sphi 0, %s211
    %s226 = sphi 0, %s212
    %s230 = sphi 0, %s230
    %s232 = sphi 0, %s230
    %s233 = sphi 0, %s232
    %s247 = sphi 0, %s233
    %s251 = sphi 0, %s251
    %s253 = sphi 0, %s251
    %s254 = sphi 0, %s253
    %s268 = sphi 0, %s254
    %s272 = sphi 0, %s272
    %s274 = sphi 0, %s272
    %s275 = sphi 0, %s274
    %s289 = sphi 0, %s275
    %s293 = sphi 0, %s293
    %s295 = sphi 0, %s293
    %s296 = sphi 0, %s295
    %s310 = sphi 0, %s296
    %s314 = sphi 0, %s314
    %s316 = sphi 0, %s314
    %s317 = sphi 0, %s316
    %s331 = sphi 0, %s317
    %s335 = sphi 0, %s335
    %s337 = sphi 0, %s335
    %s338 = sphi 0, %s337
    %s352 = sphi 0, %s338
    %s358 = sphi 0, %s360
    %s361 = sphi 0, %s358
    %s362 = sphi 0, %s361
    %s378 = sphi 0, %s362
  $region4: #{_lambda_.1} parent=0 // loop_header_branch
    %26 = sbr.rel (%p24) target = $region8
  $region5: #{_lambda_.1} parent=0 // loop_body
    %s28 = ssub.s32 %s23, 1
    %s29 = ssub.s32 %s23, 2
    %s30 = sadd.s32 %s23, 1
    %s31 = ssub.s32 %s23, %s30
    %p32 = scmp.eq.s32.totalorder %s31, 0
    %s34 = sadd.s32 %s33, 1
    %s35 = scalar_select %p32, %s33, %s34
    %p38 = pneg %p32
    %p39 = scmp.eq.s32.totalorder %s23, 1
    %p40 = por %p38, %p39
    %p41 = scmp.ne.s32.totalorder %s33, %s36
    %p42 = scmp.eq.s32.totalorder %s23, 0
    %p43 = por %p41, %p42
    %p44 = scmp.ne.s32.totalorder %s33, %s36
    %p45 = scmp.eq.s32.totalorder %s28, 1
    %p46 = por %p44, %p45
    %p47 = scmp.ne.s32.totalorder %s36, %s37
    %p48 = scmp.eq.s32.totalorder %s28, 0
    %p49 = por %p47, %p48
    %p50 = scmp.ne.s32.totalorder %s36, %s37
    %p51 = scmp.eq.s32.totalorder %s29, 1
    %p52 = por %p50, %p51
    %p54 = scmp.ne.s32.totalorder %s37, %s53
    %p55 = scmp.eq.s32.totalorder %s29, 0
    %p56 = por %p54, %p55
    %s57 = ssub.s32 %s23, %s30
    %p58 = scmp.eq.s32.totalorder %s57, 0
    %s60 = sadd.s32 %s59, 1
    %s61 = scalar_select %p58, %s59, %s60
    %p64 = pneg %p58
    %p65 = scmp.eq.s32.totalorder %s23, 1
    %p66 = por %p64, %p65
    %p67 = scmp.ne.s32.totalorder %s59, %s62
    %p68 = scmp.eq.s32.totalorder %s23, 0
    %p69 = por %p67, %p68
    %p70 = scmp.ne.s32.totalorder %s59, %s62
    %p71 = scmp.eq.s32.totalorder %s28, 1
    %p72 = por %p70, %p71
    %p73 = scmp.ne.s32.totalorder %s62, %s63
    %p74 = scmp.eq.s32.totalorder %s28, 0
    %p75 = por %p73, %p74
    %p76 = scmp.ne.s32.totalorder %s62, %s63
    %p77 = scmp.eq.s32.totalorder %s29, 1
    %p78 = por %p76, %p77
    %p80 = scmp.ne.s32.totalorder %s63, %s79
    %p81 = scmp.eq.s32.totalorder %s29, 0
    %p82 = por %p80, %p81
    %s84 = sadd.s32 %s83, 1
    %p87 = scmp.eq.s32.totalorder %s23, 1
    %p88 = scmp.ne.s32.totalorder %s83, %s85
    %p89 = scmp.eq.s32.totalorder %s23, 0
    %p90 = por %p88, %p89
    %p91 = scmp.ne.s32.totalorder %s83, %s85
    %p92 = scmp.eq.s32.totalorder %s28, 1
    %p93 = por %p91, %p92
    %p94 = scmp.ne.s32.totalorder %s85, %s86
    %p95 = scmp.eq.s32.totalorder %s28, 0
    %p96 = por %p94, %p95
    %p97 = scmp.ne.s32.totalorder %s85, %s86
    %p98 = scmp.eq.s32.totalorder %s29, 1
    %p99 = por %p97, %p98
    %p101 = scmp.ne.s32.totalorder %s86, %s100
    %p102 = scmp.eq.s32.totalorder %s29, 0
    %p103 = por %p101, %p102
    %s105 = sadd.s32 %s104, 1
    %p108 = scmp.eq.s32.totalorder %s23, 1
    %p109 = scmp.ne.s32.totalorder %s104, %s106
    %p110 = scmp.eq.s32.totalorder %s23, 0
    %p111 = por %p109, %p110
    %p112 = scmp.ne.s32.totalorder %s104, %s106
    %p113 = scmp.eq.s32.totalorder %s28, 1
    %p114 = por %p112, %p113
    %p115 = scmp.ne.s32.totalorder %s106, %s107
    %p116 = scmp.eq.s32.totalorder %s28, 0
    %p117 = por %p115, %p116
    %p118 = scmp.ne.s32.totalorder %s106, %s107
    %p119 = scmp.eq.s32.totalorder %s29, 1
    %p120 = por %p118, %p119
    %p122 = scmp.ne.s32.totalorder %s107, %s121
    %p123 = scmp.eq.s32.totalorder %s29, 0
    %p124 = por %p122, %p123
    %s126 = sadd.s32 %s125, 1
    %p129 = scmp.eq.s32.totalorder %s23, 1
    %p130 = scmp.ne.s32.totalorder %s125, %s127
    %p131 = scmp.eq.s32.totalorder %s23, 0
    %p132 = por %p130, %p131
    %p133 = scmp.ne.s32.totalorder %s125, %s127
    %p134 = scmp.eq.s32.totalorder %s28, 1
    %p135 = por %p133, %p134
    %p136 = scmp.ne.s32.totalorder %s127, %s128
    %p137 = scmp.eq.s32.totalorder %s28, 0
    %p138 = por %p136, %p137
    %p139 = scmp.ne.s32.totalorder %s127, %s128
    %p140 = scmp.eq.s32.totalorder %s29, 1
    %p141 = por %p139, %p140
    %p143 = scmp.ne.s32.totalorder %s128, %s142
    %p144 = scmp.eq.s32.totalorder %s29, 0
    %p145 = por %p143, %p144
    %s147 = sadd.s32 %s146, 1
    %p150 = scmp.eq.s32.totalorder %s23, 1
    %p151 = scmp.ne.s32.totalorder %s146, %s148
    %p152 = scmp.eq.s32.totalorder %s23, 0
    %p153 = por %p151, %p152
    %p154 = scmp.ne.s32.totalorder %s146, %s148
    %p155 = scmp.eq.s32.totalorder %s28, 1
    %p156 = por %p154, %p155
    %p157 = scmp.ne.s32.totalorder %s148, %s149
    %p158 = scmp.eq.s32.totalorder %s28, 0
    %p159 = por %p157, %p158
    %p160 = scmp.ne.s32.totalorder %s148, %s149
    %p161 = scmp.eq.s32.totalorder %s29, 1
    %p162 = por %p160, %p161
    %p164 = scmp.ne.s32.totalorder %s149, %s163
    %p165 = scmp.eq.s32.totalorder %s29, 0
    %p166 = por %p164, %p165
    %s168 = sadd.s32 %s167, 1
    %p171 = scmp.eq.s32.totalorder %s23, 1
    %p172 = scmp.ne.s32.totalorder %s167, %s169
    %p173 = scmp.eq.s32.totalorder %s23, 0
    %p174 = por %p172, %p173
    %p175 = scmp.ne.s32.totalorder %s167, %s169
    %p176 = scmp.eq.s32.totalorder %s28, 1
    %p177 = por %p175, %p176
    %p178 = scmp.ne.s32.totalorder %s169, %s170
    %p179 = scmp.eq.s32.totalorder %s28, 0
    %p180 = por %p178, %p179
    %p181 = scmp.ne.s32.totalorder %s169, %s170
    %p182 = scmp.eq.s32.totalorder %s29, 1
    %p183 = por %p181, %p182
    %p185 = scmp.ne.s32.totalorder %s170, %s184
    %p186 = scmp.eq.s32.totalorder %s29, 0
    %p187 = por %p185, %p186
    %s189 = sadd.s32 %s188, 1
    %p192 = scmp.eq.s32.totalorder %s23, 1
    %p193 = scmp.ne.s32.totalorder %s188, %s190
    %p194 = scmp.eq.s32.totalorder %s23, 0
    %p195 = por %p193, %p194
    %p196 = scmp.ne.s32.totalorder %s188, %s190
    %p197 = scmp.eq.s32.totalorder %s28, 1
    %p198 = por %p196, %p197
    %p199 = scmp.ne.s32.totalorder %s190, %s191
    %p200 = scmp.eq.s32.totalorder %s28, 0
    %p201 = por %p199, %p200
    %p202 = scmp.ne.s32.totalorder %s190, %s191
    %p203 = scmp.eq.s32.totalorder %s29, 1
    %p204 = por %p202, %p203
    %p206 = scmp.ne.s32.totalorder %s191, %s205
    %p207 = scmp.eq.s32.totalorder %s29, 0
    %p208 = por %p206, %p207
    %s210 = sadd.s32 %s209, 1
    %p213 = scmp.eq.s32.totalorder %s23, 1
    %p214 = scmp.ne.s32.totalorder %s209, %s211
    %p215 = scmp.eq.s32.totalorder %s23, 0
    %p216 = por %p214, %p215
    %p217 = scmp.ne.s32.totalorder %s209, %s211
    %p218 = scmp.eq.s32.totalorder %s28, 1
    %p219 = por %p217, %p218
    %p220 = scmp.ne.s32.totalorder %s211, %s212
    %p221 = scmp.eq.s32.totalorder %s28, 0
    %p222 = por %p220, %p221
    %p223 = scmp.ne.s32.totalorder %s211, %s212
    %p224 = scmp.eq.s32.totalorder %s29, 1
    %p225 = por %p223, %p224
    %p227 = scmp.ne.s32.totalorder %s212, %s226
    %p228 = scmp.eq.s32.totalorder %s29, 0
    %p229 = por %p227, %p228
    %s231 = sadd.s32 %s230, 1
    %p234 = scmp.eq.s32.totalorder %s23, 1
    %p235 = scmp.ne.s32.totalorder %s230, %s232
    %p236 = scmp.eq.s32.totalorder %s23, 0
    %p237 = por %p235, %p236
    %p238 = scmp.ne.s32.totalorder %s230, %s232
    %p239 = scmp.eq.s32.totalorder %s28, 1
    %p240 = por %p238, %p239
    %p241 = scmp.ne.s32.totalorder %s232, %s233
    %p242 = scmp.eq.s32.totalorder %s28, 0
    %p243 = por %p241, %p242
    %p244 = scmp.ne.s32.totalorder %s232, %s233
    %p245 = scmp.eq.s32.totalorder %s29, 1
    %p246 = por %p244, %p245
    %p248 = scmp.ne.s32.totalorder %s233, %s247
    %p249 = scmp.eq.s32.totalorder %s29, 0
    %p250 = por %p248, %p249
    %s252 = sadd.s32 %s251, 1
    %p255 = scmp.eq.s32.totalorder %s23, 1
    %p256 = scmp.ne.s32.totalorder %s251, %s253
    %p257 = scmp.eq.s32.totalorder %s23, 0
    %p258 = por %p256, %p257
    %p259 = scmp.ne.s32.totalorder %s251, %s253
    %p260 = scmp.eq.s32.totalorder %s28, 1
    %p261 = por %p259, %p260
    %p262 = scmp.ne.s32.totalorder %s253, %s254
    %p263 = scmp.eq.s32.totalorder %s28, 0
    %p264 = por %p262, %p263
    %p265 = scmp.ne.s32.totalorder %s253, %s254
    %p266 = scmp.eq.s32.totalorder %s29, 1
    %p267 = por %p265, %p266
    %p269 = scmp.ne.s32.totalorder %s254, %s268
    %p270 = scmp.eq.s32.totalorder %s29, 0
    %p271 = por %p269, %p270
    %s273 = sadd.s32 %s272, 1
    %p276 = scmp.eq.s32.totalorder %s23, 1
    %p277 = scmp.ne.s32.totalorder %s272, %s274
    %p278 = scmp.eq.s32.totalorder %s23, 0
    %p279 = por %p277, %p278
    %p280 = scmp.ne.s32.totalorder %s272, %s274
    %p281 = scmp.eq.s32.totalorder %s28, 1
    %p282 = por %p280, %p281
    %p283 = scmp.ne.s32.totalorder %s274, %s275
    %p284 = scmp.eq.s32.totalorder %s28, 0
    %p285 = por %p283, %p284
    %p286 = scmp.ne.s32.totalorder %s274, %s275
    %p287 = scmp.eq.s32.totalorder %s29, 1
    %p288 = por %p286, %p287
    %p290 = scmp.ne.s32.totalorder %s275, %s289
    %p291 = scmp.eq.s32.totalorder %s29, 0
    %p292 = por %p290, %p291
    %s294 = sadd.s32 %s293, 1
    %p297 = scmp.eq.s32.totalorder %s23, 1
    %p298 = scmp.ne.s32.totalorder %s293, %s295
    %p299 = scmp.eq.s32.totalorder %s23, 0
    %p300 = por %p298, %p299
    %p301 = scmp.ne.s32.totalorder %s293, %s295
    %p302 = scmp.eq.s32.totalorder %s28, 1
    %p303 = por %p301, %p302
    %p304 = scmp.ne.s32.totalorder %s295, %s296
    %p305 = scmp.eq.s32.totalorder %s28, 0
    %p306 = por %p304, %p305
    %p307 = scmp.ne.s32.totalorder %s295, %s296
    %p308 = scmp.eq.s32.totalorder %s29, 1
    %p309 = por %p307, %p308
    %p311 = scmp.ne.s32.totalorder %s296, %s310
    %p312 = scmp.eq.s32.totalorder %s29, 0
    %p313 = por %p311, %p312
    %s315 = sadd.s32 %s314, 1
    %p318 = scmp.eq.s32.totalorder %s23, 1
    %p319 = scmp.ne.s32.totalorder %s314, %s316
    %p320 = scmp.eq.s32.totalorder %s23, 0
    %p321 = por %p319, %p320
    %p322 = scmp.ne.s32.totalorder %s314, %s316
    %p323 = scmp.eq.s32.totalorder %s28, 1
    %p324 = por %p322, %p323
    %p325 = scmp.ne.s32.totalorder %s316, %s317
    %p326 = scmp.eq.s32.totalorder %s28, 0
    %p327 = por %p325, %p326
    %p328 = scmp.ne.s32.totalorder %s316, %s317
    %p329 = scmp.eq.s32.totalorder %s29, 1
    %p330 = por %p328, %p329
    %p332 = scmp.ne.s32.totalorder %s317, %s331
    %p333 = scmp.eq.s32.totalorder %s29, 0
    %p334 = por %p332, %p333
    %s336 = sadd.s32 %s335, 1
    %p339 = scmp.eq.s32.totalorder %s23, 1
    %p340 = scmp.ne.s32.totalorder %s335, %s337
    %p341 = scmp.eq.s32.totalorder %s23, 0
    %p342 = por %p340, %p341
    %p343 = scmp.ne.s32.totalorder %s335, %s337
    %p344 = scmp.eq.s32.totalorder %s28, 1
    %p345 = por %p343, %p344
    %p346 = scmp.ne.s32.totalorder %s337, %s338
    %p347 = scmp.eq.s32.totalorder %s28, 0
    %p348 = por %p346, %p347
    %p349 = scmp.ne.s32.totalorder %s337, %s338
    %p350 = scmp.eq.s32.totalorder %s29, 1
    %p351 = por %p349, %p350
    %p353 = scmp.ne.s32.totalorder %s338, %s352
    %p354 = scmp.eq.s32.totalorder %s29, 0
    %p355 = por %p353, %p354
    %s356 = ssub.s32 %s23, %s30
    %p357 = scmp.eq.s32.totalorder %s356, 0
    %s359 = sadd.s32 %s358, 1
    %s360 = scalar_select %p357, %s358, %s359
    %p363 = pneg %p357
    %p364 = scmp.eq.s32.totalorder %s23, 1
    %p365 = por %p363, %p364
    %p366 = scmp.ne.s32.totalorder %s358, %s361
    %p367 = scmp.eq.s32.totalorder %s23, 0
    %p368 = por %p366, %p367
    %p369 = scmp.ne.s32.totalorder %s358, %s361
    %p370 = scmp.eq.s32.totalorder %s28, 1
    %p371 = por %p369, %p370
    %p372 = scmp.ne.s32.totalorder %s361, %s362
    %p373 = scmp.eq.s32.totalorder %s28, 0
    %p374 = por %p372, %p373
    %p375 = scmp.ne.s32.totalorder %s361, %s362
    %p376 = scmp.eq.s32.totalorder %s29, 1
    %p377 = por %p375, %p376
    %p379 = scmp.ne.s32.totalorder %s362, %s378
    %p380 = scmp.eq.s32.totalorder %s29, 0
    %p381 = por %p379, %p380
    %p382 = scmp.le.s32.totalorder 1, %s23
    %p383 = scmp.lt.s32.totalorder %s23, 3
    %p384 = pnand %p382, %p383
    %p385 = pneg %p384
    // Predicated region
    $region9: #{_lambda_.1} parent=5 // pred_check
      _
    $region10: #{_lambda_.1} parent=5 // pred_check_branch
      %387 = sbr.rel (%p384) target = $region12
    $region11: #{_lambda_.1} parent=5 // pred_region
      %s388 = ssub.s32 %s23, 1
      // Predicated region
      $region13: #{_lambda_.1} parent=11 // pred_check
        %p389 = pneg %p96
      $region14: #{_lambda_.1} parent=11 // pred_check_branch
        %391 = sbr.rel (%p389) target = $region16
      $region15: #{_lambda_.1} parent=11 // pred_region
        _
      $region16: #{_lambda_.1} parent=11 // pred_fallthru
        _
      // Predicated region
      $region17: #{_lambda_.1} parent=11 // pred_check
        %p392 = pneg %p117
      $region18: #{_lambda_.1} parent=11 // pred_check_branch
        %394 = sbr.rel (%p392) target = $region20
      $region19: #{_lambda_.1} parent=11 // pred_region
        _
      $region20: #{_lambda_.1} parent=11 // pred_fallthru
        _
      // Predicated region
      $region21: #{_lambda_.1} parent=11 // pred_check
        %p395 = pneg %p138
      $region22: #{_lambda_.1} parent=11 // pred_check_branch
        %397 = sbr.rel (%p395) target = $region24
      $region23: #{_lambda_.1} parent=11 // pred_region
        _
      $region24: #{_lambda_.1} parent=11 // pred_fallthru
        _
      // Predicated region
      $region25: #{_lambda_.1} parent=11 // pred_check
        %p398 = pneg %p159
      $region26: #{_lambda_.1} parent=11 // pred_check_branch
        %400 = sbr.rel (%p398) target = $region28
      $region27: #{_lambda_.1} parent=11 // pred_region
        _
      $region28: #{_lambda_.1} parent=11 // pred_fallthru
        _
      // Predicated region
      $region29: #{_lambda_.1} parent=11 // pred_check
        %p401 = pneg %p180
      $region30: #{_lambda_.1} parent=11 // pred_check_branch
        %403 = sbr.rel (%p401) target = $region32
      $region31: #{_lambda_.1} parent=11 // pred_region
        _
      $region32: #{_lambda_.1} parent=11 // pred_fallthru
        _
      // Predicated region
      $region33: #{_lambda_.1} parent=11 // pred_check
        %p404 = pneg %p201
      $region34: #{_lambda_.1} parent=11 // pred_check_branch
        %406 = sbr.rel (%p404) target = $region36
      $region35: #{_lambda_.1} parent=11 // pred_region
        _
      $region36: #{_lambda_.1} parent=11 // pred_fallthru
        _
      // Predicated region
      $region37: #{_lambda_.1} parent=11 // pred_check
        %p407 = pneg %p222
      $region38: #{_lambda_.1} parent=11 // pred_check_branch
        %409 = sbr.rel (%p407) target = $region40
      $region39: #{_lambda_.1} parent=11 // pred_region
        _
      $region40: #{_lambda_.1} parent=11 // pred_fallthru
        _
      // Predicated region
      $region41: #{_lambda_.1} parent=11 // pred_check
        %p410 = pneg %p243
      $region42: #{_lambda_.1} parent=11 // pred_check_branch
        %412 = sbr.rel (%p410) target = $region44
      $region43: #{_lambda_.1} parent=11 // pred_region
        _
      $region44: #{_lambda_.1} parent=11 // pred_fallthru
        _
      // Predicated region
      $region45: #{_lambda_.1} parent=11 // pred_check
        %p413 = pneg %p264
      $region46: #{_lambda_.1} parent=11 // pred_check_branch
        %415 = sbr.rel (%p413) target = $region48
      $region47: #{_lambda_.1} parent=11 // pred_region
        _
      $region48: #{_lambda_.1} parent=11 // pred_fallthru
        _
      // Predicated region
      $region49: #{_lambda_.1} parent=11 // pred_check
        %p416 = pneg %p285
      $region50: #{_lambda_.1} parent=11 // pred_check_branch
        %418 = sbr.rel (%p416) target = $region52
      $region51: #{_lambda_.1} parent=11 // pred_region
        _
      $region52: #{_lambda_.1} parent=11 // pred_fallthru
        _
      // Predicated region
      $region53: #{_lambda_.1} parent=11 // pred_check
        %p419 = pneg %p306
      $region54: #{_lambda_.1} parent=11 // pred_check_branch
        %421 = sbr.rel (%p419) target = $region56
      $region55: #{_lambda_.1} parent=11 // pred_region
        _
      $region56: #{_lambda_.1} parent=11 // pred_fallthru
        _
      // Predicated region
      $region57: #{_lambda_.1} parent=11 // pred_check
        %p422 = pneg %p327
      $region58: #{_lambda_.1} parent=11 // pred_check_branch
        %424 = sbr.rel (%p422) target = $region60
      $region59: #{_lambda_.1} parent=11 // pred_region
        _
      $region60: #{_lambda_.1} parent=11 // pred_fallthru
        _
      // Predicated region
      $region61: #{_lambda_.1} parent=11 // pred_check
        %p425 = pneg %p348
      $region62: #{_lambda_.1} parent=11 // pred_check_branch
        %427 = sbr.rel (%p425) target = $region64
      $region63: #{_lambda_.1} parent=11 // pred_region
        _
      $region64: #{_lambda_.1} parent=11 // pred_fallthru
        _
    $region12: #{_lambda_.1} parent=5 // pred_fallthru
      _
    %p428 = scmp.lt.s32.totalorder %s23, 2
    // Predicated region
    $region65: #{_lambda_.1} parent=5 // pred_check
      %p429 = pneg %p428
    $region66: #{_lambda_.1} parent=5 // pred_check_branch
      %431 = sbr.rel (%p429) target = $region68
    $region67: #{_lambda_.1} parent=5 // pred_region
      // Predicated region
      $region69: #{_lambda_.1} parent=67 // pred_check
        %p432 = pneg %p43
      $region70: #{_lambda_.1} parent=67 // pred_check_branch
        %434 = sbr.rel (%p432) target = $region72
      $region71: #{_lambda_.1} parent=67 // pred_region
        %s435 = smul.u32 32, %s23
        %p436 = scmp.lt.s32.totalorder %s435, 63
        %s437 = scalar_select %p436, %s435, 63
        %s438 = smul.addr %s437, 4
        %s439 = scalar_lea.vmem %s0, %s438
        %s440 = smul.u32 32, %s23
      $region72: #{_lambda_.1} parent=67 // pred_fallthru
        _
      // Predicated region
      $region73: #{_lambda_.1} parent=67 // pred_check
        %p441 = pneg %p69
      $region74: #{_lambda_.1} parent=67 // pred_check_branch
        %443 = sbr.rel (%p441) target = $region76
      $region75: #{_lambda_.1} parent=67 // pred_region
        %s444 = smul.u32 32, %s23
        %p445 = scmp.lt.s32.totalorder %s444, 63
        %s446 = scalar_select %p445, %s444, 63
        %s447 = smul.addr %s446, 4
        %s448 = scalar_lea.vmem %s1, %s447
        %s449 = smul.u32 32, %s23
      $region76: #{_lambda_.1} parent=67 // pred_fallthru
        _
    $region68: #{_lambda_.1} parent=5 // pred_fallthru
      _
    %p450 = scmp.le.s32.totalorder 1, %s23
    %p451 = scmp.lt.s32.totalorder %s23, 3
    %p452 = pnand %p450, %p451
    %p453 = pneg %p452
    // Predicated region
    $region77: #{_lambda_.1} parent=5 // pred_check
      _
    $region78: #{_lambda_.1} parent=5 // pred_check_branch
      %455 = sbr.rel (%p452) target = $region80
    $region79: #{_lambda_.1} parent=5 // pred_region
      %s456 = ssub.s32 %s23, 1
      %s457 = smul.u32 32, %s28
      %p458 = scmp.lt.s32.totalorder %s457, 63
      %s459 = scalar_select %p458, %s457, 63
      %s460 = smul.addr %s459, 4
      %s461 = scalar_lea.vmem %s0, %s460
      %p462 = pneg %p49
      %p463 = pneg %p46
      %s464 = smul.u32 32, %s28
      %p465 = scmp.lt.s32.totalorder %s464, 63
      %s466 = scalar_select %p465, %s464, 63
      %s467 = smul.addr %s466, 4
      %s468 = scalar_lea.vmem %s1, %s467
      %p469 = pneg %p75
      %p470 = pneg %p72
      %p471 = pneg %p96
      %p472 = pneg %p93
      %p473 = pneg %p117
      %p474 = pneg %p114
      %p475 = pneg %p138
      %p476 = pneg %p135
      %p477 = pneg %p159
      %p478 = pneg %p156
      %p479 = pneg %p180
      %p480 = pneg %p177
      %p481 = pneg %p201
      %p482 = pneg %p198
      %p483 = pneg %p222
      %p484 = pneg %p219
      %p485 = pneg %p243
      %p486 = pneg %p240
      %p487 = pneg %p264
      %p488 = pneg %p261
      %p489 = pneg %p285
      %p490 = pneg %p282
      %p491 = pneg %p306
      %p492 = pneg %p303
      %p493 = pneg %p327
      %p494 = pneg %p324
      %p495 = pneg %p348
      %p496 = pneg %p345
      %p497 = pneg %p374
      %p498 = pneg %p371
      %s499 = smul.u32 2, %s28
      %p500 = scmp.lt.s32.totalorder %s499, 3
      %s501 = scalar_select %p500, %s499, 3
      %s502 = scalar_lea.vmem %s15, %s501
      %s503 = smul.u32 32, %s28
      %p504 = scmp.lt.s32.totalorder %s503, 63
      %s505 = scalar_select %p504, %s503, 63
      %s506 = smul.addr %s505, 4
      %s507 = scalar_lea.vmem %s0, %s506
      %s508 = smul.u32 32, %s28
      %s509 = smul.u32 32, %s28
      %p510 = scmp.lt.s32.totalorder %s509, 63
      %s511 = scalar_select %p510, %s509, 63
      %s512 = smul.addr %s511, 4
      %s513 = scalar_lea.vmem %s1, %s512
      %s514 = smul.u32 32, %s28
      %s515 = smul.u32 2, %s28
      %p516 = scmp.lt.s32.totalorder %s515, 3
      %s517 = scalar_select %p516, %s515, 3
      %s518 = scalar_lea.vmem %s15, %s517
      %s519 = smul.u32 2, %s28
      %v521 = vld [vmem:[%s507] sm:$0xf]
      %v522 = vld [vmem:[%s507 + $0x4] sm:$0xf]
      %v523 = vld [vmem:[%s507 + $0x8] sm:$0xf]
      %v524 = vld [vmem:[%s507 + $0xc] sm:$0xf]
      %v525 = vld [vmem:[%s507 + $0x10] sm:$0xf]
      %v526 = vld [vmem:[%s507 + $0x14] sm:$0xf]
      %v527 = vld [vmem:[%s507 + $0x18] sm:$0xf]
      %v528 = vld [vmem:[%s507 + $0x1c] sm:$0xf]
      %v529 = vld [vmem:[%s507 + $0x20] sm:$0xf]
      %v530 = vld [vmem:[%s507 + $0x24] sm:$0xf]
      %v531 = vld [vmem:[%s507 + $0x28] sm:$0xf]
      %v532 = vld [vmem:[%s507 + $0x2c] sm:$0xf]
      %v533 = vld [vmem:[%s507 + $0x30] sm:$0xf]
      %v534 = vld [vmem:[%s507 + $0x34] sm:$0xf]
      %v535 = vld [vmem:[%s507 + $0x38] sm:$0xf]
      %v536 = vld [vmem:[%s507 + $0x3c] sm:$0xf]
      %v537 = vld [vmem:[%s507 + $0x40] sm:$0xf]
      %v538 = vld [vmem:[%s507 + $0x44] sm:$0xf]
      %v539 = vld [vmem:[%s507 + $0x48] sm:$0xf]
      %v540 = vld [vmem:[%s507 + $0x4c] sm:$0xf]
      %v541 = vld [vmem:[%s507 + $0x50] sm:$0xf]
      %v542 = vld [vmem:[%s507 + $0x54] sm:$0xf]
      %v543 = vld [vmem:[%s507 + $0x58] sm:$0xf]
      %v544 = vld [vmem:[%s507 + $0x5c] sm:$0xf]
      %v545 = vld [vmem:[%s507 + $0x60] sm:$0xf]
      %v546 = vld [vmem:[%s507 + $0x64] sm:$0xf]
      %v547 = vld [vmem:[%s507 + $0x68] sm:$0xf]
      %v548 = vld [vmem:[%s507 + $0x6c] sm:$0xf]
      %v549 = vld [vmem:[%s507 + $0x70] sm:$0xf]
      %v550 = vld [vmem:[%s507 + $0x74] sm:$0xf]
      %v551 = vld [vmem:[%s507 + $0x78] sm:$0xf]
      %v552 = vld [vmem:[%s507 + $0x7c] sm:$0xf]
      %v553 = vld [vmem:[%s2] sm:$0xff]
      %v554 = vld [vmem:[%s2 + $0x8] sm:$0xff]
      %v555 = vld [vmem:[%s2 + $0x10] sm:$0xff]
      %v556 = vld [vmem:[%s2 + $0x18] sm:$0xff]
      %v557 = vld [vmem:[%s2 + $0x20] sm:$0xff]
      %v558 = vld [vmem:[%s2 + $0x28] sm:$0xff]
      %v559 = vld [vmem:[%s2 + $0x30] sm:$0xff]
      %v560 = vld [vmem:[%s2 + $0x38] sm:$0xff]
      %v561 = vld [vmem:[%s2 + $0x40] sm:$0xff]
      %v562 = vld [vmem:[%s2 + $0x48] sm:$0xff]
      %v563 = vld [vmem:[%s2 + $0x50] sm:$0xff]
      %v564 = vld [vmem:[%s2 + $0x58] sm:$0xff]
      %v565 = vld [vmem:[%s513] sm:$0xf]
      %v566 = vld [vmem:[%s513 + $0x4] sm:$0xf]
      %v567 = vld [vmem:[%s513 + $0x8] sm:$0xf]
      %v568 = vld [vmem:[%s513 + $0xc] sm:$0xf]
      %v569 = vld [vmem:[%s513 + $0x10] sm:$0xf]
      %v570 = vld [vmem:[%s513 + $0x14] sm:$0xf]
      %v571 = vld [vmem:[%s513 + $0x18] sm:$0xf]
      %v572 = vld [vmem:[%s513 + $0x1c] sm:$0xf]
      %v573 = vld [vmem:[%s513 + $0x20] sm:$0xf]
      %v574 = vld [vmem:[%s513 + $0x24] sm:$0xf]
      %v575 = vld [vmem:[%s513 + $0x28] sm:$0xf]
      %v576 = vld [vmem:[%s513 + $0x2c] sm:$0xf]
      %v577 = vld [vmem:[%s513 + $0x30] sm:$0xf]
      %v578 = vld [vmem:[%s513 + $0x34] sm:$0xf]
      %v579 = vld [vmem:[%s513 + $0x38] sm:$0xf]
      %v580 = vld [vmem:[%s513 + $0x3c] sm:$0xf]
      %v581 = vld [vmem:[%s513 + $0x40] sm:$0xf]
      %v582 = vld [vmem:[%s513 + $0x44] sm:$0xf]
      %v583 = vld [vmem:[%s513 + $0x48] sm:$0xf]
      %v584 = vld [vmem:[%s513 + $0x4c] sm:$0xf]
      %v585 = vld [vmem:[%s513 + $0x50] sm:$0xf]
      %v586 = vld [vmem:[%s513 + $0x54] sm:$0xf]
      %v587 = vld [vmem:[%s513 + $0x58] sm:$0xf]
      %v588 = vld [vmem:[%s513 + $0x5c] sm:$0xf]
      %v589 = vld [vmem:[%s513 + $0x60] sm:$0xf]
      %v590 = vld [vmem:[%s513 + $0x64] sm:$0xf]
      %v591 = vld [vmem:[%s513 + $0x68] sm:$0xf]
      %v592 = vld [vmem:[%s513 + $0x6c] sm:$0xf]
      %v593 = vld [vmem:[%s513 + $0x70] sm:$0xf]
      %v594 = vld [vmem:[%s513 + $0x74] sm:$0xf]
      %v595 = vld [vmem:[%s513 + $0x78] sm:$0xf]
      %v596 = vld [vmem:[%s513 + $0x7c] sm:$0xf]
      %v597 = vld [vmem:[%s3] sm:$0xff]
      %v598 = vld [vmem:[%s3 + $0x8] sm:$0xff]
      %v599 = vld [vmem:[%s3 + $0x10] sm:$0xff]
      %v600 = vld [vmem:[%s3 + $0x18] sm:$0xff]
      %v633 = vunpack.c.l.b16 %v565
      %v634 = vunpack.c.l.b16 %v566
      %v635 = vunpack.c.l.b16 %v567
      %v636 = vunpack.c.l.b16 %v568
      %v637 = vunpack.c.l.b16 %v569
      %v638 = vunpack.c.l.b16 %v570
      %v639 = vunpack.c.l.b16 %v571
      %v640 = vunpack.c.l.b16 %v572
      %v641 = vunpack.c.l.b16 %v573
      %v642 = vunpack.c.l.b16 %v574
      %v643 = vunpack.c.l.b16 %v575
      %v644 = vunpack.c.l.b16 %v576
      %v645 = vunpack.c.l.b16 %v577
      %v646 = vunpack.c.l.b16 %v578
      %v647 = vunpack.c.l.b16 %v579
      %v648 = vunpack.c.l.b16 %v580
      %v649 = vunpack.c.l.b16 %v581
      %v650 = vunpack.c.l.b16 %v582
      %v651 = vunpack.c.l.b16 %v583
      %v652 = vunpack.c.l.b16 %v584
      %v653 = vunpack.c.l.b16 %v585
      %v654 = vunpack.c.l.b16 %v586
      %v655 = vunpack.c.l.b16 %v587
      %v656 = vunpack.c.l.b16 %v588
      %v657 = vunpack.c.l.b16 %v589
      %v658 = vunpack.c.l.b16 %v590
      %v659 = vunpack.c.l.b16 %v591
      %v660 = vunpack.c.l.b16 %v592
      %v661 = vunpack.c.l.b16 %v593
      %v662 = vunpack.c.l.b16 %v594
      %v663 = vunpack.c.l.b16 %v595
      %v664 = vunpack.c.l.b16 %v596
      %v665 = vpack.c.b16 %v634, %v633
      %v666 = vpack.c.b16 %v636, %v635
      %v667 = vpack.c.b16 %v638, %v637
      %v668 = vpack.c.b16 %v640, %v639
      %v669 = vpack.c.b16 %v642, %v641
      %v670 = vpack.c.b16 %v644, %v643
      %v671 = vpack.c.b16 %v646, %v645
      %v672 = vpack.c.b16 %v648, %v647
      %v673 = vpack.c.b16 %v650, %v649
      %v674 = vpack.c.b16 %v652, %v651
      %v675 = vpack.c.b16 %v654, %v653
      %v676 = vpack.c.b16 %v656, %v655
      %v677 = vpack.c.b16 %v658, %v657
      %v678 = vpack.c.b16 %v660, %v659
      %v679 = vpack.c.b16 %v662, %v661
      %v680 = vpack.c.b16 %v664, %v663
      %v685 = vunpack.c.l.b16 %v597
      %v686 = vunpack.c.h.b16 %v597
      %v687 = vunpack.c.l.b16 %v598
      %v688 = vunpack.c.h.b16 %v598
      %v689 = vunpack.c.l.b16 %v599
      %v690 = vunpack.c.h.b16 %v599
      %v691 = vunpack.c.l.b16 %v600
      %v692 = vunpack.c.h.b16 %v600
      %v693 = vpack.c.b16 %v687, %v685
      %v694 = vpack.c.b16 %v688, %v686
      %v695 = vpack.c.b16 %v691, %v689
      %v696 = vpack.c.b16 %v692, %v690
      %vm701 = vcmask 261120
      %v703 = vsel %vm701, %v665, 0
      %v706 = vsel %vm701, %v666, 0
      %v709 = vsel %vm701, %v667, 0
      %v712 = vsel %vm701, %v668, 0
      %v715 = vsel %vm701, %v669, 0
      %v718 = vsel %vm701, %v670, 0
      %v721 = vsel %vm701, %v671, 0
      %v724 = vsel %vm701, %v672, 0
      %v727 = vsel %vm701, %v673, 0
      %v730 = vsel %vm701, %v674, 0
      %v733 = vsel %vm701, %v675, 0
      %v736 = vsel %vm701, %v676, 0
      %v739 = vsel %vm701, %v677, 0
      %v742 = vsel %vm701, %v678, 0
      %v745 = vsel %vm701, %v679, 0
      %v748 = vsel %vm701, %v680, 0
      %750 = vmatprep.subr.bf16.mxu0 %v694
      %751 = vmatpush1.bf16.msra.mxu0 %v693
      %752 = vmatprep.subr.bf16.mxu0 %v696
      %753 = vmatpush1.bf16.msra.mxu0 %v695
      %754 = vmatprep.subr.bf16.mxu0 0
      %755 = vmatpush1.bf16.msra.mxu0 0
      %756 = vmatprep.subr.bf16.mxu0 0
      %757 = vmatpush1.bf16.msra.mxu0 0
      %758 = vmatprep.subr.bf16.mxu0 0
      %759 = vmatpush1.bf16.msra.mxu0 0
      %760 = vmatprep.subr.bf16.mxu0 0
      %761 = vmatpush1.bf16.msra.mxu0 0
      %762 = vmatprep.subr.bf16.mxu0 0
      %763 = vmatpush1.bf16.msra.mxu0 0
      %764 = vmatprep.subr.bf16.mxu0 0
      %765 = vmatpush1.bf16.msra.mxu0 0
      %766 = vmatprep.subr.bf16.mxu0 0
      %767 = vmatpush1.bf16.msra.mxu0 0
      %768 = vmatprep.subr.bf16.mxu0 0
      %769 = vmatpush1.bf16.msra.mxu0 0
      %770 = vmatprep.subr.bf16.mxu0 0
      %771 = vmatpush1.bf16.msra.mxu0 0
      %772 = vmatprep.subr.bf16.mxu0 0
      %773 = vmatpush1.bf16.msra.mxu0 0
      %774 = vmatprep.subr.bf16.mxu0 0
      %775 = vmatpush1.bf16.msra.mxu0 0
      %776 = vmatprep.subr.bf16.mxu0 0
      %777 = vmatpush1.bf16.msra.mxu0 0
      %778 = vmatprep.subr.bf16.mxu0 0
      %779 = vmatpush1.bf16.msra.mxu0 0
      %780 = vmatprep.subr.bf16.mxu0 0
      %781 = vmatpush1.bf16.msra.mxu0 0
      %782 = vmatprep.mubr.bf16.mxu0 0
      %783 = vmatmul.mubr.bf16.gmra.mrb[0].mxu0 %v703
      %v784 = vpop.f32.mrb[0].mxu0
      %v785 = vadd.f32 0.0, %v784
      %v786 = vpop.f32.mrb[0].mxu0
      %v787 = vadd.f32 0.0, %v786
      %v788 = vpop.f32.mrb[0].mxu0
      %v789 = vadd.f32 0.0, %v788
      %v790 = vpop.f32.mrb[0].mxu0
      %v791 = vadd.f32 0.0, %v790
      %792 = vmatprep.mubr.bf16.mxu0 0
      %793 = vmatmul.mubr.bf16.gmra.mrb[0].mxu0 %v706
      %v794 = vpop.f32.mrb[0].mxu0
      %v795 = vadd.f32 0.0, %v794
      %v796 = vpop.f32.mrb[0].mxu0
      %v797 = vadd.f32 0.0, %v796
      %v798 = vpop.f32.mrb[0].mxu0
      %v799 = vadd.f32 0.0, %v798
      %v800 = vpop.f32.mrb[0].mxu0
      %v801 = vadd.f32 0.0, %v800
      %802 = vmatprep.mubr.bf16.mxu0 0
      %803 = vmatmul.mubr.bf16.gmra.mrb[0].mxu0 %v709
      %v804 = vpop.f32.mrb[0].mxu0
      %v805 = vadd.f32 0.0, %v804
      %v806 = vpop.f32.mrb[0].mxu0
      %v807 = vadd.f32 0.0, %v806
      %v808 = vpop.f32.mrb[0].mxu0
      %v809 = vadd.f32 0.0, %v808
      %v810 = vpop.f32.mrb[0].mxu0
      %v811 = vadd.f32 0.0, %v810
      %812 = vmatprep.mubr.bf16.mxu0 0
      %813 = vmatmul.mubr.bf16.gmra.mrb[0].mxu0 %v712
      %v814 = vpop.f32.mrb[0].mxu0
      %v815 = vadd.f32 0.0, %v814
      %v816 = vpop.f32.mrb[0].mxu0
      %v817 = vadd.f32 0.0, %v816
      %v818 = vpop.f32.mrb[0].mxu0
      %v819 = vadd.f32 0.0, %v818
      %v820 = vpop.f32.mrb[0].mxu0
      %v821 = vadd.f32 0.0, %v820
      %822 = vmatprep.mubr.bf16.mxu0 0
      %823 = vmatmul.mubr.bf16.gmra.mrb[0].mxu0 %v715
      %v824 = vpop.f32.mrb[0].mxu0
      %v825 = vadd.f32 0.0, %v824
      %v826 = vpop.f32.mrb[0].mxu0
      %v827 = vadd.f32 0.0, %v826
      %v828 = vpop.f32.mrb[0].mxu0
      %v829 = vadd.f32 0.0, %v828
      %v830 = vpop.f32.mrb[0].mxu0
      %v831 = vadd.f32 0.0, %v830
      %832 = vmatprep.mubr.bf16.mxu0 0
      %833 = vmatmul.mubr.bf16.gmra.mrb[0].mxu0 %v718
      %v834 = vpop.f32.mrb[0].mxu0
      %v835 = vadd.f32 0.0, %v834
      %v836 = vpop.f32.mrb[0].mxu0
      %v837 = vadd.f32 0.0, %v836
      %v838 = vpop.f32.mrb[0].mxu0
      %v839 = vadd.f32 0.0, %v838
      %v840 = vpop.f32.mrb[0].mxu0
      %v841 = vadd.f32 0.0, %v840
      %842 = vmatprep.mubr.bf16.mxu0 0
      %843 = vmatmul.mubr.bf16.gmra.mrb[0].mxu0 %v721
      %v844 = vpop.f32.mrb[0].mxu0
      %v845 = vadd.f32 0.0, %v844
      %v846 = vpop.f32.mrb[0].mxu0
      %v847 = vadd.f32 0.0, %v846
      %v848 = vpop.f32.mrb[0].mxu0
      %v849 = vadd.f32 0.0, %v848
      %v850 = vpop.f32.mrb[0].mxu0
      %v851 = vadd.f32 0.0, %v850
      %852 = vmatprep.mubr.bf16.mxu0 0
      %853 = vmatmul.mubr.bf16.gmra.mrb[0].mxu0 %v724
      %v854 = vpop.f32.mrb[0].mxu0
      %v855 = vadd.f32 0.0, %v854
      %v856 = vpop.f32.mrb[0].mxu0
      %v857 = vadd.f32 0.0, %v856
      %v858 = vpop.f32.mrb[0].mxu0
      %v859 = vadd.f32 0.0, %v858
      %v860 = vpop.f32.mrb[0].mxu0
      %v861 = vadd.f32 0.0, %v860
      %862 = vmatprep.mubr.bf16.mxu0 0
      %863 = vmatmul.mubr.bf16.gmra.mrb[0].mxu0 %v727
      %v864 = vpop.f32.mrb[0].mxu0
      %v865 = vadd.f32 0.0, %v864
      %v866 = vpop.f32.mrb[0].mxu0
      %v867 = vadd.f32 0.0, %v866
      %v868 = vpop.f32.mrb[0].mxu0
      %v869 = vadd.f32 0.0, %v868
      %v870 = vpop.f32.mrb[0].mxu0
      %v871 = vadd.f32 0.0, %v870
      %872 = vmatprep.mubr.bf16.mxu0 0
      %873 = vmatmul.mubr.bf16.gmra.mrb[0].mxu0 %v730
      %v874 = vpop.f32.mrb[0].mxu0
      %v875 = vadd.f32 0.0, %v874
      %v876 = vpop.f32.mrb[0].mxu0
      %v877 = vadd.f32 0.0, %v876
      %v878 = vpop.f32.mrb[0].mxu0
      %v879 = vadd.f32 0.0, %v878
      %v880 = vpop.f32.mrb[0].mxu0
      %v881 = vadd.f32 0.0, %v880
      %882 = vmatprep.mubr.bf16.mxu0 0
      %883 = vmatmul.mubr.bf16.gmra.mrb[0].mxu0 %v733
      %v884 = vpop.f32.mrb[0].mxu0
      %v885 = vadd.f32 0.0, %v884
      %v886 = vpop.f32.mrb[0].mxu0
      %v887 = vadd.f32 0.0, %v886
      %v888 = vpop.f32.mrb[0].mxu0
      %v889 = vadd.f32 0.0, %v888
      %v890 = vpop.f32.mrb[0].mxu0
      %v891 = vadd.f32 0.0, %v890
      %892 = vmatprep.mubr.bf16.mxu0 0
      %893 = vmatmul.mubr.bf16.gmra.mrb[0].mxu0 %v736
      %v894 = vpop.f32.mrb[0].mxu0
      %v895 = vadd.f32 0.0, %v894
      %v896 = vpop.f32.mrb[0].mxu0
      %v897 = vadd.f32 0.0, %v896
      %v898 = vpop.f32.mrb[0].mxu0
      %v899 = vadd.f32 0.0, %v898
      %v900 = vpop.f32.mrb[0].mxu0
      %v901 = vadd.f32 0.0, %v900
      %902 = vmatprep.mubr.bf16.mxu0 0
      %903 = vmatmul.mubr.bf16.gmra.mrb[0].mxu0 %v739
      %v904 = vpop.f32.mrb[0].mxu0
      %v905 = vadd.f32 0.0, %v904
      %v906 = vpop.f32.mrb[0].mxu0
      %v907 = vadd.f32 0.0, %v906
      %v908 = vpop.f32.mrb[0].mxu0
      %v909 = vadd.f32 0.0, %v908
      %v910 = vpop.f32.mrb[0].mxu0
      %v911 = vadd.f32 0.0, %v910
      %912 = vmatprep.mubr.bf16.mxu0 0
      %913 = vmatmul.mubr.bf16.gmra.mrb[0].mxu0 %v742
      %v914 = vpop.f32.mrb[0].mxu0
      %v915 = vadd.f32 0.0, %v914
      %v916 = vpop.f32.mrb[0].mxu0
      %v917 = vadd.f32 0.0, %v916
      %v918 = vpop.f32.mrb[0].mxu0
      %v919 = vadd.f32 0.0, %v918
      %v920 = vpop.f32.mrb[0].mxu0
      %v921 = vadd.f32 0.0, %v920
      %922 = vmatprep.mubr.bf16.mxu0 0
      %923 = vmatmul.mubr.bf16.gmra.mrb[0].mxu0 %v745
      %v924 = vpop.f32.mrb[0].mxu0
      %v925 = vadd.f32 0.0, %v924
      %v926 = vpop.f32.mrb[0].mxu0
      %v927 = vadd.f32 0.0, %v926
      %v928 = vpop.f32.mrb[0].mxu0
      %v929 = vadd.f32 0.0, %v928
      %v930 = vpop.f32.mrb[0].mxu0
      %v931 = vadd.f32 0.0, %v930
      %932 = vmatprep.mubr.bf16.mxu0 0
      %933 = vmatmul.mubr.bf16.gmra.mrb[0].mxu0 %v748
      %v934 = vpop.f32.mrb[0].mxu0
      %v935 = vadd.f32 0.0, %v934
      %v936 = vpop.f32.mrb[0].mxu0
      %v937 = vadd.f32 0.0, %v936
      %v938 = vpop.f32.mrb[0].mxu0
      %v939 = vadd.f32 0.0, %v938
      %v940 = vpop.f32.mrb[0].mxu0
      %v941 = vadd.f32 0.0, %v940
      %942 = vdwg.mxu0
      %v975 = vunpack.c.l.b16 %v521
      %v976 = vunpack.c.l.b16 %v522
      %v977 = vunpack.c.l.b16 %v523
      %v978 = vunpack.c.l.b16 %v524
      %v979 = vunpack.c.l.b16 %v525
      %v980 = vunpack.c.l.b16 %v526
      %v981 = vunpack.c.l.b16 %v527
      %v982 = vunpack.c.l.b16 %v528
      %v983 = vunpack.c.l.b16 %v529
      %v984 = vunpack.c.l.b16 %v530
      %v985 = vunpack.c.l.b16 %v531
      %v986 = vunpack.c.l.b16 %v532
      %v987 = vunpack.c.l.b16 %v533
      %v988 = vunpack.c.l.b16 %v534
      %v989 = vunpack.c.l.b16 %v535
      %v990 = vunpack.c.l.b16 %v536
      %v991 = vunpack.c.l.b16 %v537
      %v992 = vunpack.c.l.b16 %v538
      %v993 = vunpack.c.l.b16 %v539
      %v994 = vunpack.c.l.b16 %v540
      %v995 = vunpack.c.l.b16 %v541
      %v996 = vunpack.c.l.b16 %v542
      %v997 = vunpack.c.l.b16 %v543
      %v998 = vunpack.c.l.b16 %v544
      %v999 = vunpack.c.l.b16 %v545
      %v1000 = vunpack.c.l.b16 %v546
      %v1001 = vunpack.c.l.b16 %v547
      %v1002 = vunpack.c.l.b16 %v548
      %v1003 = vunpack.c.l.b16 %v549
      %v1004 = vunpack.c.l.b16 %v550
      %v1005 = vunpack.c.l.b16 %v551
      %v1006 = vunpack.c.l.b16 %v552
      %v1007 = vpack.c.b16 %v976, %v975
      %v1008 = vpack.c.b16 %v978, %v977
      %v1009 = vpack.c.b16 %v980, %v979
      %v1010 = vpack.c.b16 %v982, %v981
      %v1011 = vpack.c.b16 %v984, %v983
      %v1012 = vpack.c.b16 %v986, %v985
      %v1013 = vpack.c.b16 %v988, %v987
      %v1014 = vpack.c.b16 %v990, %v989
      %v1015 = vpack.c.b16 %v992, %v991
      %v1016 = vpack.c.b16 %v994, %v993
      %v1017 = vpack.c.b16 %v996, %v995
      %v1018 = vpack.c.b16 %v998, %v997
      %v1019 = vpack.c.b16 %v1000, %v999
      %v1020 = vpack.c.b16 %v1002, %v1001
      %v1021 = vpack.c.b16 %v1004, %v1003
      %v1022 = vpack.c.b16 %v1006, %v1005
      %v1035 = vunpack.c.l.b16 %v553
      %v1036 = vunpack.c.h.b16 %v553
      %v1037 = vunpack.c.l.b16 %v554
      %v1038 = vunpack.c.h.b16 %v554
      %v1039 = vunpack.c.l.b16 %v555
      %v1040 = vunpack.c.h.b16 %v555
      %v1041 = vunpack.c.l.b16 %v556
      %v1042 = vunpack.c.h.b16 %v556
      %v1043 = vunpack.c.l.b16 %v557
      %v1044 = vunpack.c.h.b16 %v557
      %v1045 = vunpack.c.l.b16 %v558
      %v1046 = vunpack.c.h.b16 %v558
      %v1047 = vunpack.c.l.b16 %v559
      %v1048 = vunpack.c.h.b16 %v559
      %v1049 = vunpack.c.l.b16 %v560
      %v1050 = vunpack.c.h.b16 %v560
      %v1051 = vunpack.c.l.b16 %v561
      %v1052 = vunpack.c.h.b16 %v561
      %v1053 = vunpack.c.l.b16 %v562
      %v1054 = vunpack.c.h.b16 %v562
      %v1055 = vunpack.c.l.b16 %v563
      %v1056 = vunpack.c.h.b16 %v563
      %v1057 = vunpack.c.l.b16 %v564
      %v1058 = vunpack.c.h.b16 %v564
      %v1059 = vpack.c.b16 %v1037, %v1035
      %v1060 = vpack.c.b16 %v1038, %v1036
      %v1061 = vpack.c.b16 %v1041, %v1039
      %v1062 = vpack.c.b16 %v1042, %v1040
      %v1063 = vpack.c.b16 %v1045, %v1043
      %v1064 = vpack.c.b16 %v1046, %v1044
      %v1065 = vpack.c.b16 %v1049, %v1047
      %v1066 = vpack.c.b16 %v1050, %v1048
      %v1067 = vpack.c.b16 %v1053, %v1051
      %v1068 = vpack.c.b16 %v1054, %v1052
      %v1069 = vpack.c.b16 %v1057, %v1055
      %v1070 = vpack.c.b16 %v1058, %v1056
      %vm1083 = vcmask 785408
      %v1085 = vsel %vm1083, %v1007, 0
      %v1088 = vsel %vm1083, %v1008, 0
      %v1091 = vsel %vm1083, %v1009, 0
      %v1094 = vsel %vm1083, %v1010, 0
      %v1097 = vsel %vm1083, %v1011, 0
      %v1100 = vsel %vm1083, %v1012, 0
      %v1103 = vsel %vm1083, %v1013, 0
      %v1106 = vsel %vm1083, %v1014, 0
      %v1109 = vsel %vm1083, %v1015, 0
      %v1112 = vsel %vm1083, %v1016, 0
      %v1115 = vsel %vm1083, %v1017, 0
      %v1118 = vsel %vm1083, %v1018, 0
      %v1121 = vsel %vm1083, %v1019, 0
      %v1124 = vsel %vm1083, %v1020, 0
      %v1127 = vsel %vm1083, %v1021, 0
      %v1130 = vsel %vm1083, %v1022, 0
      %1132 = vmatprep.subr.bf16.mxu0 %v1060
      %1133 = vmatpush1.bf16.msra.mxu0 %v1059
      %1134 = vmatprep.subr.bf16.mxu0 %v1062
      %1135 = vmatpush1.bf16.msra.mxu0 %v1061
      %1136 = vmatprep.subr.bf16.mxu0 %v1064
      %1137 = vmatpush1.bf16.msra.mxu0 %v1063
      %1138 = vmatprep.subr.bf16.mxu0 %v1066
      %1139 = vmatpush1.bf16.msra.mxu0 %v1065
      %1140 = vmatprep.subr.bf16.mxu0 %v1068
      %1141 = vmatpush1.bf16.msra.mxu0 %v1067
      %1142 = vmatprep.subr.bf16.mxu0 %v1070
      %1143 = vmatpush1.bf16.msra.mxu0 %v1069
      %1144 = vmatprep.subr.bf16.mxu0 0
      %1145 = vmatpush1.bf16.msra.mxu0 0
      %1146 = vmatprep.subr.bf16.mxu0 0
      %1147 = vmatpush1.bf16.msra.mxu0 0
      %1148 = vmatprep.subr.bf16.mxu0 0
      %1149 = vmatpush1.bf16.msra.mxu0 0
      %1150 = vmatprep.subr.bf16.mxu0 0
      %1151 = vmatpush1.bf16.msra.mxu0 0
      %1152 = vmatprep.subr.bf16.mxu0 0
      %1153 = vmatpush1.bf16.msra.mxu0 0
      %1154 = vmatprep.subr.bf16.mxu0 0
      %1155 = vmatpush1.bf16.msra.mxu0 0
      %1156 = vmatprep.subr.bf16.mxu0 0
      %1157 = vmatpush1.bf16.msra.mxu0 0
      %1158 = vmatprep.subr.bf16.mxu0 0
      %1159 = vmatpush1.bf16.msra.mxu0 0
      %1160 = vmatprep.subr.bf16.mxu0 0
      %1161 = vmatpush1.bf16.msra.mxu0 0
      %1162 = vmatprep.subr.bf16.mxu0 0
      %1163 = vmatpush1.bf16.msra.mxu0 0
      %1164 = vmatprep.mubr.bf16.mxu0 0
      %1165 = vmatmul.mubr.bf16.gmra.mrb[0].mxu0 %v1085
      %v1166 = vpop.f32.mrb[0].mxu0
      %v1167 = vadd.f32 %v785, %v1166
      %v1168 = vpop.f32.mrb[0].mxu0
      %v1169 = vadd.f32 %v787, %v1168
      %v1170 = vpop.f32.mrb[0].mxu0
      %v1171 = vadd.f32 %v789, %v1170
      %v1172 = vpop.f32.mrb[0].mxu0
      %v1173 = vadd.f32 %v791, %v1172
      %1174 = vmatprep.mubr.bf16.mxu0 0
      %1175 = vmatmul.mubr.bf16.gmra.mrb[0].mxu0 %v1088
      %v1176 = vpop.f32.mrb[0].mxu0
      %v1177 = vadd.f32 %v795, %v1176
      %v1178 = vpop.f32.mrb[0].mxu0
      %v1179 = vadd.f32 %v797, %v1178
      %v1180 = vpop.f32.mrb[0].mxu0
      %v1181 = vadd.f32 %v799, %v1180
      %v1182 = vpop.f32.mrb[0].mxu0
      %v1183 = vadd.f32 %v801, %v1182
      %1184 = vmatprep.mubr.bf16.mxu0 0
      %1185 = vmatmul.mubr.bf16.gmra.mrb[0].mxu0 %v1091
      %v1186 = vpop.f32.mrb[0].mxu0
      %v1187 = vadd.f32 %v805, %v1186
      %v1188 = vpop.f32.mrb[0].mxu0
      %v1189 = vadd.f32 %v807, %v1188
      %v1190 = vpop.f32.mrb[0].mxu0
      %v1191 = vadd.f32 %v809, %v1190
      %v1192 = vpop.f32.mrb[0].mxu0
      %v1193 = vadd.f32 %v811, %v1192
      %1194 = vmatprep.mubr.bf16.mxu0 0
      %1195 = vmatmul.mubr.bf16.gmra.mrb[0].mxu0 %v1094
      %v1196 = vpop.f32.mrb[0].mxu0
      %v1197 = vadd.f32 %v815, %v1196
      %v1198 = vpop.f32.mrb[0].mxu0
      %v1199 = vadd.f32 %v817, %v1198
      %v1200 = vpop.f32.mrb[0].mxu0
      %v1201 = vadd.f32 %v819, %v1200
      %v1202 = vpop.f32.mrb[0].mxu0
      %v1203 = vadd.f32 %v821, %v1202
      %1204 = vmatprep.mubr.bf16.mxu0 0
      %1205 = vmatmul.mubr.bf16.gmra.mrb[0].mxu0 %v1097
      %v1206 = vpop.f32.mrb[0].mxu0
      %v1207 = vadd.f32 %v825, %v1206
      %v1208 = vpop.f32.mrb[0].mxu0
      %v1209 = vadd.f32 %v827, %v1208
      %v1210 = vpop.f32.mrb[0].mxu0
      %v1211 = vadd.f32 %v829, %v1210
      %v1212 = vpop.f32.mrb[0].mxu0
      %v1213 = vadd.f32 %v831, %v1212
      %1214 = vmatprep.mubr.bf16.mxu0 0
      %1215 = vmatmul.mubr.bf16.gmra.mrb[0].mxu0 %v1100
      %v1216 = vpop.f32.mrb[0].mxu0
      %v1217 = vadd.f32 %v835, %v1216
      %v1218 = vpop.f32.mrb[0].mxu0
      %v1219 = vadd.f32 %v837, %v1218
      %v1220 = vpop.f32.mrb[0].mxu0
      %v1221 = vadd.f32 %v839, %v1220
      %v1222 = vpop.f32.mrb[0].mxu0
      %v1223 = vadd.f32 %v841, %v1222
      %1224 = vmatprep.mubr.bf16.mxu0 0
      %1225 = vmatmul.mubr.bf16.gmra.mrb[0].mxu0 %v1103
      %v1226 = vpop.f32.mrb[0].mxu0
      %v1227 = vadd.f32 %v845, %v1226
      %v1228 = vpop.f32.mrb[0].mxu0
      %v1229 = vadd.f32 %v847, %v1228
      %v1230 = vpop.f32.mrb[0].mxu0
      %v1231 = vadd.f32 %v849, %v1230
      %v1232 = vpop.f32.mrb[0].mxu0
      %v1233 = vadd.f32 %v851, %v1232
      %1234 = vmatprep.mubr.bf16.mxu0 0
      %1235 = vmatmul.mubr.bf16.gmra.mrb[0].mxu0 %v1106
      %v1236 = vpop.f32.mrb[0].mxu0
      %v1237 = vadd.f32 %v855, %v1236
      %v1238 = vpop.f32.mrb[0].mxu0
      %v1239 = vadd.f32 %v857, %v1238
      %v1240 = vpop.f32.mrb[0].mxu0
      %v1241 = vadd.f32 %v859, %v1240
      %v1242 = vpop.f32.mrb[0].mxu0
      %v1243 = vadd.f32 %v861, %v1242
      %1244 = vmatprep.mubr.bf16.mxu0 0
      %1245 = vmatmul.mubr.bf16.gmra.mrb[0].mxu0 %v1109
      %v1246 = vpop.f32.mrb[0].mxu0
      %v1247 = vadd.f32 %v865, %v1246
      %v1248 = vpop.f32.mrb[0].mxu0
      %v1249 = vadd.f32 %v867, %v1248
      %v1250 = vpop.f32.mrb[0].mxu0
      %v1251 = vadd.f32 %v869, %v1250
      %v1252 = vpop.f32.mrb[0].mxu0
      %v1253 = vadd.f32 %v871, %v1252
      %1254 = vmatprep.mubr.bf16.mxu0 0
      %1255 = vmatmul.mubr.bf16.gmra.mrb[0].mxu0 %v1112
      %v1256 = vpop.f32.mrb[0].mxu0
      %v1257 = vadd.f32 %v875, %v1256
      %v1258 = vpop.f32.mrb[0].mxu0
      %v1259 = vadd.f32 %v877, %v1258
      %v1260 = vpop.f32.mrb[0].mxu0
      %v1261 = vadd.f32 %v879, %v1260
      %v1262 = vpop.f32.mrb[0].mxu0
      %v1263 = vadd.f32 %v881, %v1262
      %1264 = vmatprep.mubr.bf16.mxu0 0
      %1265 = vmatmul.mubr.bf16.gmra.mrb[0].mxu0 %v1115
      %v1266 = vpop.f32.mrb[0].mxu0
      %v1267 = vadd.f32 %v885, %v1266
      %v1268 = vpop.f32.mrb[0].mxu0
      %v1269 = vadd.f32 %v887, %v1268
      %v1270 = vpop.f32.mrb[0].mxu0
      %v1271 = vadd.f32 %v889, %v1270
      %v1272 = vpop.f32.mrb[0].mxu0
      %v1273 = vadd.f32 %v891, %v1272
      %1274 = vmatprep.mubr.bf16.mxu0 0
      %1275 = vmatmul.mubr.bf16.gmra.mrb[0].mxu0 %v1118
      %v1276 = vpop.f32.mrb[0].mxu0
      %v1277 = vadd.f32 %v895, %v1276
      %v1278 = vpop.f32.mrb[0].mxu0
      %v1279 = vadd.f32 %v897, %v1278
      %v1280 = vpop.f32.mrb[0].mxu0
      %v1281 = vadd.f32 %v899, %v1280
      %v1282 = vpop.f32.mrb[0].mxu0
      %v1283 = vadd.f32 %v901, %v1282
      %1284 = vmatprep.mubr.bf16.mxu0 0
      %1285 = vmatmul.mubr.bf16.gmra.mrb[0].mxu0 %v1121
      %v1286 = vpop.f32.mrb[0].mxu0
      %v1287 = vadd.f32 %v905, %v1286
      %v1288 = vpop.f32.mrb[0].mxu0
      %v1289 = vadd.f32 %v907, %v1288
      %v1290 = vpop.f32.mrb[0].mxu0
      %v1291 = vadd.f32 %v909, %v1290
      %v1292 = vpop.f32.mrb[0].mxu0
      %v1293 = vadd.f32 %v911, %v1292
      %1294 = vmatprep.mubr.bf16.mxu0 0
      %1295 = vmatmul.mubr.bf16.gmra.mrb[0].mxu0 %v1124
      %v1296 = vpop.f32.mrb[0].mxu0
      %v1297 = vadd.f32 %v915, %v1296
      %v1298 = vpop.f32.mrb[0].mxu0
      %v1299 = vadd.f32 %v917, %v1298
      %v1300 = vpop.f32.mrb[0].mxu0
      %v1301 = vadd.f32 %v919, %v1300
      %v1302 = vpop.f32.mrb[0].mxu0
      %v1303 = vadd.f32 %v921, %v1302
      %1304 = vmatprep.mubr.bf16.mxu0 0
      %1305 = vmatmul.mubr.bf16.gmra.mrb[0].mxu0 %v1127
      %v1306 = vpop.f32.mrb[0].mxu0
      %v1307 = vadd.f32 %v925, %v1306
      %v1308 = vpop.f32.mrb[0].mxu0
      %v1309 = vadd.f32 %v927, %v1308
      %v1310 = vpop.f32.mrb[0].mxu0
      %v1311 = vadd.f32 %v929, %v1310
      %v1312 = vpop.f32.mrb[0].mxu0
      %v1313 = vadd.f32 %v931, %v1312
      %1314 = vmatprep.mubr.bf16.mxu0 0
      %1315 = vmatmul.mubr.bf16.gmra.mrb[0].mxu0 %v1130
      %v1316 = vpop.f32.mrb[0].mxu0
      %v1317 = vadd.f32 %v935, %v1316
      %v1318 = vpop.f32.mrb[0].mxu0
      %v1319 = vadd.f32 %v937, %v1318
      %v1320 = vpop.f32.mrb[0].mxu0
      %v1321 = vadd.f32 %v939, %v1320
      %v1322 = vpop.f32.mrb[0].mxu0
      %v1323 = vadd.f32 %v941, %v1322
      %1324 = vdwg.mxu0
      %v1325 = vld [vmem:[%s4] sm:$0x3]
      %v1327 = vlaneseq
      %v1328 = vshrl.u32 %v1327, 7
      %v1329 = vsub.s32 0, %v1328
      %v1330 = vrot.slane %v1325, %v1329
      %v1331 = vlaneseq
      %v1332 = vshrl.u32 %v1331, 7
      %v1333 = vsub.s32 1, %v1332
      %v1334 = vrot.slane %v1325, %v1333
      %v1337 = vadd.f32 %v1167, %v1330
      %v1338 = vadd.f32 %v1169, %v1334
      %v1339 = vadd.f32 %v1171, %v1330
      %v1340 = vadd.f32 %v1173, %v1334
      %v1341 = vadd.f32 %v1177, %v1330
      %v1342 = vadd.f32 %v1179, %v1334
      %v1343 = vadd.f32 %v1181, %v1330
      %v1344 = vadd.f32 %v1183, %v1334
      %v1345 = vadd.f32 %v1187, %v1330
      %v1346 = vadd.f32 %v1189, %v1334
      %v1347 = vadd.f32 %v1191, %v1330
      %v1348 = vadd.f32 %v1193, %v1334
      %v1349 = vadd.f32 %v1197, %v1330
      %v1350 = vadd.f32 %v1199, %v1334
      %v1351 = vadd.f32 %v1201, %v1330
      %v1352 = vadd.f32 %v1203, %v1334
      %v1353 = vadd.f32 %v1207, %v1330
      %v1354 = vadd.f32 %v1209, %v1334
      %v1355 = vadd.f32 %v1211, %v1330
      %v1356 = vadd.f32 %v1213, %v1334
      %v1357 = vadd.f32 %v1217, %v1330
      %v1358 = vadd.f32 %v1219, %v1334
      %v1359 = vadd.f32 %v1221, %v1330
      %v1360 = vadd.f32 %v1223, %v1334
      %v1361 = vadd.f32 %v1227, %v1330
      %v1362 = vadd.f32 %v1229, %v1334
      %v1363 = vadd.f32 %v1231, %v1330
      %v1364 = vadd.f32 %v1233, %v1334
      %v1365 = vadd.f32 %v1237, %v1330
      %v1366 = vadd.f32 %v1239, %v1334
      %v1367 = vadd.f32 %v1241, %v1330
      %v1368 = vadd.f32 %v1243, %v1334
      %v1369 = vadd.f32 %v1247, %v1330
      %v1370 = vadd.f32 %v1249, %v1334
      %v1371 = vadd.f32 %v1251, %v1330
      %v1372 = vadd.f32 %v1253, %v1334
      %v1373 = vadd.f32 %v1257, %v1330
      %v1374 = vadd.f32 %v1259, %v1334
      %v1375 = vadd.f32 %v1261, %v1330
      %v1376 = vadd.f32 %v1263, %v1334
      %v1377 = vadd.f32 %v1267, %v1330
      %v1378 = vadd.f32 %v1269, %v1334
      %v1379 = vadd.f32 %v1271, %v1330
      %v1380 = vadd.f32 %v1273, %v1334
      %v1381 = vadd.f32 %v1277, %v1330
      %v1382 = vadd.f32 %v1279, %v1334
      %v1383 = vadd.f32 %v1281, %v1330
      %v1384 = vadd.f32 %v1283, %v1334
      %v1385 = vadd.f32 %v1287, %v1330
      %v1386 = vadd.f32 %v1289, %v1334
      %v1387 = vadd.f32 %v1291, %v1330
      %v1388 = vadd.f32 %v1293, %v1334
      %v1389 = vadd.f32 %v1297, %v1330
      %v1390 = vadd.f32 %v1299, %v1334
      %v1391 = vadd.f32 %v1301, %v1330
      %v1392 = vadd.f32 %v1303, %v1334
      %v1393 = vadd.f32 %v1307, %v1330
      %v1394 = vadd.f32 %v1309, %v1334
      %v1395 = vadd.f32 %v1311, %v1330
      %v1396 = vadd.f32 %v1313, %v1334
      %v1397 = vadd.f32 %v1317, %v1330
      %v1398 = vadd.f32 %v1319, %v1334
      %v1399 = vadd.f32 %v1321, %v1330
      %v1400 = vadd.f32 %v1323, %v1334
      %v1401 = vmax.f32 %v1337, 0.0
      %v1402 = vmax.f32 %v1338, 0.0
      %v1403 = vmax.f32 %v1339, 0.0
      %v1404 = vmax.f32 %v1340, 0.0
      %v1405 = vmax.f32 %v1341, 0.0
      %v1406 = vmax.f32 %v1342, 0.0
      %v1407 = vmax.f32 %v1343, 0.0
      %v1408 = vmax.f32 %v1344, 0.0
      %v1409 = vmax.f32 %v1345, 0.0
      %v1410 = vmax.f32 %v1346, 0.0
      %v1411 = vmax.f32 %v1347, 0.0
      %v1412 = vmax.f32 %v1348, 0.0
      %v1413 = vmax.f32 %v1349, 0.0
      %v1414 = vmax.f32 %v1350, 0.0
      %v1415 = vmax.f32 %v1351, 0.0
      %v1416 = vmax.f32 %v1352, 0.0
      %v1417 = vmax.f32 %v1353, 0.0
      %v1418 = vmax.f32 %v1354, 0.0
      %v1419 = vmax.f32 %v1355, 0.0
      %v1420 = vmax.f32 %v1356, 0.0
      %v1421 = vmax.f32 %v1357, 0.0
      %v1422 = vmax.f32 %v1358, 0.0
      %v1423 = vmax.f32 %v1359, 0.0
      %v1424 = vmax.f32 %v1360, 0.0
      %v1425 = vmax.f32 %v1361, 0.0
      %v1426 = vmax.f32 %v1362, 0.0
      %v1427 = vmax.f32 %v1363, 0.0
      %v1428 = vmax.f32 %v1364, 0.0
      %v1429 = vmax.f32 %v1365, 0.0
      %v1430 = vmax.f32 %v1366, 0.0
      %v1431 = vmax.f32 %v1367, 0.0
      %v1432 = vmax.f32 %v1368, 0.0
      %v1433 = vmax.f32 %v1369, 0.0
      %v1434 = vmax.f32 %v1370, 0.0
      %v1435 = vmax.f32 %v1371, 0.0
      %v1436 = vmax.f32 %v1372, 0.0
      %v1437 = vmax.f32 %v1373, 0.0
      %v1438 = vmax.f32 %v1374, 0.0
      %v1439 = vmax.f32 %v1375, 0.0
      %v1440 = vmax.f32 %v1376, 0.0
      %v1441 = vmax.f32 %v1377, 0.0
      %v1442 = vmax.f32 %v1378, 0.0
      %v1443 = vmax.f32 %v1379, 0.0
      %v1444 = vmax.f32 %v1380, 0.0
      %v1445 = vmax.f32 %v1381, 0.0
      %v1446 = vmax.f32 %v1382, 0.0
      %v1447 = vmax.f32 %v1383, 0.0
      %v1448 = vmax.f32 %v1384, 0.0
      %v1449 = vmax.f32 %v1385, 0.0
      %v1450 = vmax.f32 %v1386, 0.0
      %v1451 = vmax.f32 %v1387, 0.0
      %v1452 = vmax.f32 %v1388, 0.0
      %v1453 = vmax.f32 %v1389, 0.0
      %v1454 = vmax.f32 %v1390, 0.0
      %v1455 = vmax.f32 %v1391, 0.0
      %v1456 = vmax.f32 %v1392, 0.0
      %v1457 = vmax.f32 %v1393, 0.0
      %v1458 = vmax.f32 %v1394, 0.0
      %v1459 = vmax.f32 %v1395, 0.0
      %v1460 = vmax.f32 %v1396, 0.0
      %v1461 = vmax.f32 %v1397, 0.0
      %v1462 = vmax.f32 %v1398, 0.0
      %v1463 = vmax.f32 %v1399, 0.0
      %v1464 = vmax.f32 %v1400, 0.0
      %v1465 = vpack.c.bf16 %v1403, %v1401
      %v1466 = vpack.c.bf16 %v1404, %v1402
      %v1467 = vpack.c.bf16 %v1407, %v1405
      %v1468 = vpack.c.bf16 %v1408, %v1406
      %v1469 = vpack.c.bf16 %v1411, %v1409
      %v1470 = vpack.c.bf16 %v1412, %v1410
      %v1471 = vpack.c.bf16 %v1415, %v1413
      %v1472 = vpack.c.bf16 %v1416, %v1414
      %v1473 = vpack.c.bf16 %v1419, %v1417
      %v1474 = vpack.c.bf16 %v1420, %v1418
      %v1475 = vpack.c.bf16 %v1423, %v1421
      %v1476 = vpack.c.bf16 %v1424, %v1422
      %v1477 = vpack.c.bf16 %v1427, %v1425
      %v1478 = vpack.c.bf16 %v1428, %v1426
      %v1479 = vpack.c.bf16 %v1431, %v1429
      %v1480 = vpack.c.bf16 %v1432, %v1430
      %v1481 = vpack.c.bf16 %v1435, %v1433
      %v1482 = vpack.c.bf16 %v1436, %v1434
      %v1483 = vpack.c.bf16 %v1439, %v1437
      %v1484 = vpack.c.bf16 %v1440, %v1438
      %v1485 = vpack.c.bf16 %v1443, %v1441
      %v1486 = vpack.c.bf16 %v1444, %v1442
      %v1487 = vpack.c.bf16 %v1447, %v1445
      %v1488 = vpack.c.bf16 %v1448, %v1446
      %v1489 = vpack.c.bf16 %v1451, %v1449
      %v1490 = vpack.c.bf16 %v1452, %v1450
      %v1491 = vpack.c.bf16 %v1455, %v1453
      %v1492 = vpack.c.bf16 %v1456, %v1454
      %v1493 = vpack.c.bf16 %v1459, %v1457
      %v1494 = vpack.c.bf16 %v1460, %v1458
      %v1495 = vpack.c.bf16 %v1463, %v1461
      %v1496 = vpack.c.bf16 %v1464, %v1462
      %v1497 = vld [vmem:[%s5] sm:$0xff]
      %v1498 = vld [vmem:[%s5 + $0x8] sm:$0xff]
      %v1499 = vld [vmem:[%s5 + $0x10] sm:$0xff]
      %v1500 = vld [vmem:[%s5 + $0x18] sm:$0xff]
      %v1501 = vld [vmem:[%s5 + $0x20] sm:$0xff]
      %v1502 = vld [vmem:[%s5 + $0x28] sm:$0xff]
      %v1503 = vld [vmem:[%s5 + $0x30] sm:$0xff]
      %v1504 = vld [vmem:[%s5 + $0x38] sm:$0xff]
      %v1505 = vld [vmem:[%s5 + $0x40] sm:$0xff]
      %v1506 = vld [vmem:[%s5 + $0x48] sm:$0xff]
      %v1507 = vld [vmem:[%s5 + $0x50] sm:$0xff]
      %v1508 = vld [vmem:[%s5 + $0x58] sm:$0xff]
      %v1509 = vld [vmem:[%s5 + $0x60] sm:$0xff]
      %v1510 = vld [vmem:[%s5 + $0x68] sm:$0xff]
      %v1511 = vld [vmem:[%s5 + $0x70] sm:$0xff]
      %v1512 = vld [vmem:[%s5 + $0x78] sm:$0xff]
      %v1513 = vld [vmem:[%s5 + $0x80] sm:$0xff]
      %v1514 = vld [vmem:[%s5 + $0x88] sm:$0xff]
      %v1515 = vld [vmem:[%s5 + $0x90] sm:$0xff]
      %v1516 = vld [vmem:[%s5 + $0x98] sm:$0xff]
      %v1517 = vld [vmem:[%s5 + $0xa0] sm:$0xff]
      %v1518 = vld [vmem:[%s5 + $0xa8] sm:$0xff]
      %v1519 = vld [vmem:[%s5 + $0xb0] sm:$0xff]
      %v1520 = vld [vmem:[%s5 + $0xb8] sm:$0xff]
      %v1521 = vld [vmem:[%s5 + $0xc0] sm:$0xff]
      %v1522 = vld [vmem:[%s5 + $0xc8] sm:$0xff]
      %v1523 = vld [vmem:[%s5 + $0xd0] sm:$0xff]
      %v1524 = vld [vmem:[%s5 + $0xd8] sm:$0xff]
      %v1525 = vld [vmem:[%s5 + $0xe0] sm:$0xff]
      %v1526 = vld [vmem:[%s5 + $0xe8] sm:$0xff]
      %v1527 = vld [vmem:[%s5 + $0xf0] sm:$0xff]
      %v1528 = vld [vmem:[%s5 + $0xf8] sm:$0xff]
      %v1529 = vld [vmem:[%s6] sm:$0x3]
      %v1531 = vlaneseq
      %v1532 = vshrl.u32 %v1531, 7
      %v1533 = vsub.s32 0, %v1532
      %v1534 = vrot.slane %v1529, %v1533
      %v1535 = vlaneseq
      %v1536 = vshrl.u32 %v1535, 7
      %v1537 = vsub.s32 1, %v1536
      %v1538 = vrot.slane %v1529, %v1537
      %v1573 = vunpack.c.l.b16 %v1497
      %v1574 = vunpack.c.h.b16 %v1497
      %v1575 = vunpack.c.l.b16 %v1498
      %v1576 = vunpack.c.h.b16 %v1498
      %v1577 = vunpack.c.l.b16 %v1499
      %v1578 = vunpack.c.h.b16 %v1499
      %v1579 = vunpack.c.l.b16 %v1500
      %v1580 = vunpack.c.h.b16 %v1500
      %v1581 = vunpack.c.l.b16 %v1501
      %v1582 = vunpack.c.h.b16 %v1501
      %v1583 = vunpack.c.l.b16 %v1502
      %v1584 = vunpack.c.h.b16 %v1502
      %v1585 = vunpack.c.l.b16 %v1503
      %v1586 = vunpack.c.h.b16 %v1503
      %v1587 = vunpack.c.l.b16 %v1504
      %v1588 = vunpack.c.h.b16 %v1504
      %v1589 = vunpack.c.l.b16 %v1505
      %v1590 = vunpack.c.h.b16 %v1505
      %v1591 = vunpack.c.l.b16 %v1506
      %v1592 = vunpack.c.h.b16 %v1506
      %v1593 = vunpack.c.l.b16 %v1507
      %v1594 = vunpack.c.h.b16 %v1507
      %v1595 = vunpack.c.l.b16 %v1508
      %v1596 = vunpack.c.h.b16 %v1508
      %v1597 = vunpack.c.l.b16 %v1509
      %v1598 = vunpack.c.h.b16 %v1509
      %v1599 = vunpack.c.l.b16 %v1510
      %v1600 = vunpack.c.h.b16 %v1510
      %v1601 = vunpack.c.l.b16 %v1511
      %v1602 = vunpack.c.h.b16 %v1511
      %v1603 = vunpack.c.l.b16 %v1512
      %v1604 = vunpack.c.h.b16 %v1512
      %v1605 = vunpack.c.l.b16 %v1513
      %v1606 = vunpack.c.h.b16 %v1513
      %v1607 = vunpack.c.l.b16 %v1514
      %v1608 = vunpack.c.h.b16 %v1514
      %v1609 = vunpack.c.l.b16 %v1515
      %v1610 = vunpack.c.h.b16 %v1515
      %v1611 = vunpack.c.l.b16 %v1516
      %v1612 = vunpack.c.h.b16 %v1516
      %v1613 = vunpack.c.l.b16 %v1517
      %v1614 = vunpack.c.h.b16 %v1517
      %v1615 = vunpack.c.l.b16 %v1518
      %v1616 = vunpack.c.h.b16 %v1518
      %v1617 = vunpack.c.l.b16 %v1519
      %v1618 = vunpack.c.h.b16 %v1519
      %v1619 = vunpack.c.l.b16 %v1520
      %v1620 = vunpack.c.h.b16 %v1520
      %v1621 = vunpack.c.l.b16 %v1521
      %v1622 = vunpack.c.h.b16 %v1521
      %v1623 = vunpack.c.l.b16 %v1522
      %v1624 = vunpack.c.h.b16 %v1522
      %v1625 = vunpack.c.l.b16 %v1523
      %v1626 = vunpack.c.h.b16 %v1523
      %v1627 = vunpack.c.l.b16 %v1524
      %v1628 = vunpack.c.h.b16 %v1524
      %v1629 = vunpack.c.l.b16 %v1525
      %v1630 = vunpack.c.h.b16 %v1525
      %v1631 = vunpack.c.l.b16 %v1526
      %v1632 = vunpack.c.h.b16 %v1526
      %v1633 = vunpack.c.l.b16 %v1527
      %v1634 = vunpack.c.h.b16 %v1527
      %v1635 = vunpack.c.l.b16 %v1528
      %v1636 = vunpack.c.h.b16 %v1528
      %v1637 = vpack.c.b16 %v1575, %v1573
      %v1638 = vpack.c.b16 %v1576, %v1574
      %v1639 = vpack.c.b16 %v1579, %v1577
      %v1640 = vpack.c.b16 %v1580, %v1578
      %v1641 = vpack.c.b16 %v1583, %v1581
      %v1642 = vpack.c.b16 %v1584, %v1582
      %v1643 = vpack.c.b16 %v1587, %v1585
      %v1644 = vpack.c.b16 %v1588, %v1586
      %v1645 = vpack.c.b16 %v1591, %v1589
      %v1646 = vpack.c.b16 %v1592, %v1590
      %v1647 = vpack.c.b16 %v1595, %v1593
      %v1648 = vpack.c.b16 %v1596, %v1594
      %v1649 = vpack.c.b16 %v1599, %v1597
      %v1650 = vpack.c.b16 %v1600, %v1598
      %v1651 = vpack.c.b16 %v1603, %v1601
      %v1652 = vpack.c.b16 %v1604, %v1602
      %v1653 = vpack.c.b16 %v1607, %v1605
      %v1654 = vpack.c.b16 %v1608, %v1606
      %v1655 = vpack.c.b16 %v1611, %v1609
      %v1656 = vpack.c.b16 %v1612, %v1610
      %v1657 = vpack.c.b16 %v1615, %v1613
      %v1658 = vpack.c.b16 %v1616, %v1614
      %v1659 = vpack.c.b16 %v1619, %v1617
      %v1660 = vpack.c.b16 %v1620, %v1618
      %v1661 = vpack.c.b16 %v1623, %v1621
      %v1662 = vpack.c.b16 %v1624, %v1622
      %v1663 = vpack.c.b16 %v1627, %v1625
      %v1664 = vpack.c.b16 %v1628, %v1626
      %v1665 = vpack.c.b16 %v1631, %v1629
      %v1666 = vpack.c.b16 %v1632, %v1630
      %v1667 = vpack.c.b16 %v1635, %v1633
      %v1668 = vpack.c.b16 %v1636, %v1634
      %1701 = vmatprep.subr.bf16.mxu0 %v1638
      %1702 = vmatpush1.bf16.msra.mxu0 %v1637
      %1703 = vmatprep.subr.bf16.mxu0 %v1640
      %1704 = vmatpush1.bf16.msra.mxu0 %v1639
      %1705 = vmatprep.subr.bf16.mxu0 %v1642
      %1706 = vmatpush1.bf16.msra.mxu0 %v1641
      %1707 = vmatprep.subr.bf16.mxu0 %v1644
      %1708 = vmatpush1.bf16.msra.mxu0 %v1643
      %1709 = vmatprep.subr.bf16.mxu0 %v1646
      %1710 = vmatpush1.bf16.msra.mxu0 %v1645
      %1711 = vmatprep.subr.bf16.mxu0 %v1648
      %1712 = vmatpush1.bf16.msra.mxu0 %v1647
      %1713 = vmatprep.subr.bf16.mxu0 %v1650
      %1714 = vmatpush1.bf16.msra.mxu0 %v1649
      %1715 = vmatprep.subr.bf16.mxu0 %v1652
      %1716 = vmatpush1.bf16.msra.mxu0 %v1651
      %1717 = vmatprep.subr.bf16.mxu0 %v1654
      %1718 = vmatpush1.bf16.msra.mxu0 %v1653
      %1719 = vmatprep.subr.bf16.mxu0 %v1656
      %1720 = vmatpush1.bf16.msra.mxu0 %v1655
      %1721 = vmatprep.subr.bf16.mxu0 %v1658
      %1722 = vmatpush1.bf16.msra.mxu0 %v1657
      %1723 = vmatprep.subr.bf16.mxu0 %v1660
      %1724 = vmatpush1.bf16.msra.mxu0 %v1659
      %1725 = vmatprep.subr.bf16.mxu0 %v1662
      %1726 = vmatpush1.bf16.msra.mxu0 %v1661
      %1727 = vmatprep.subr.bf16.mxu0 %v1664
      %1728 = vmatpush1.bf16.msra.mxu0 %v1663
      %1729 = vmatprep.subr.bf16.mxu0 %v1666
      %1730 = vmatpush1.bf16.msra.mxu0 %v1665
      %1731 = vmatprep.subr.bf16.mxu0 %v1668
      %1732 = vmatpush1.bf16.msra.mxu0 %v1667
      %1733 = vmatprep.mubr.bf16.mxu0 %v1466
      %1734 = vmatmul.mubr.bf16.gmra.mrb[0].mxu0 %v1465
      %v1735 = vpop.f32.mrb[0].mxu0
      %v1736 = vadd.f32 %v1534, %v1735
      %v1737 = vpop.f32.mrb[0].mxu0
      %v1738 = vadd.f32 %v1538, %v1737
      %v1739 = vpop.f32.mrb[0].mxu0
      %v1740 = vadd.f32 %v1534, %v1739
      %v1741 = vpop.f32.mrb[0].mxu0
      %v1742 = vadd.f32 %v1538, %v1741
      %1743 = vmatprep.mubr.bf16.mxu0 %v1468
      %1744 = vmatmul.mubr.bf16.gmra.mrb[0].mxu0 %v1467
      %v1745 = vpop.f32.mrb[0].mxu0
      %v1746 = vadd.f32 %v1534, %v1745
      %v1747 = vpop.f32.mrb[0].mxu0
      %v1748 = vadd.f32 %v1538, %v1747
      %v1749 = vpop.f32.mrb[0].mxu0
      %v1750 = vadd.f32 %v1534, %v1749
      %v1751 = vpop.f32.mrb[0].mxu0
      %v1752 = vadd.f32 %v1538, %v1751
      %1753 = vmatprep.mubr.bf16.mxu0 %v1470
      %1754 = vmatmul.mubr.bf16.gmra.mrb[0].mxu0 %v1469
      %v1755 = vpop.f32.mrb[0].mxu0
      %v1756 = vadd.f32 %v1534, %v1755
      %v1757 = vpop.f32.mrb[0].mxu0
      %v1758 = vadd.f32 %v1538, %v1757
      %v1759 = vpop.f32.mrb[0].mxu0
      %v1760 = vadd.f32 %v1534, %v1759
      %v1761 = vpop.f32.mrb[0].mxu0
      %v1762 = vadd.f32 %v1538, %v1761
      %1763 = vmatprep.mubr.bf16.mxu0 %v1472
      %1764 = vmatmul.mubr.bf16.gmra.mrb[0].mxu0 %v1471
      %v1765 = vpop.f32.mrb[0].mxu0
      %v1766 = vadd.f32 %v1534, %v1765
      %v1767 = vpop.f32.mrb[0].mxu0
      %v1768 = vadd.f32 %v1538, %v1767
      %v1769 = vpop.f32.mrb[0].mxu0
      %v1770 = vadd.f32 %v1534, %v1769
      %v1771 = vpop.f32.mrb[0].mxu0
      %v1772 = vadd.f32 %v1538, %v1771
      %1773 = vmatprep.mubr.bf16.mxu0 %v1474
      %1774 = vmatmul.mubr.bf16.gmra.mrb[0].mxu0 %v1473
      %v1775 = vpop.f32.mrb[0].mxu0
      %v1776 = vadd.f32 %v1534, %v1775
      %v1777 = vpop.f32.mrb[0].mxu0
      %v1778 = vadd.f32 %v1538, %v1777
      %v1779 = vpop.f32.mrb[0].mxu0
      %v1780 = vadd.f32 %v1534, %v1779
      %v1781 = vpop.f32.mrb[0].mxu0
      %v1782 = vadd.f32 %v1538, %v1781
      %1783 = vmatprep.mubr.bf16.mxu0 %v1476
      %1784 = vmatmul.mubr.bf16.gmra.mrb[0].mxu0 %v1475
      %v1785 = vpop.f32.mrb[0].mxu0
      %v1786 = vadd.f32 %v1534, %v1785
      %v1787 = vpop.f32.mrb[0].mxu0
      %v1788 = vadd.f32 %v1538, %v1787
      %v1789 = vpop.f32.mrb[0].mxu0
      %v1790 = vadd.f32 %v1534, %v1789
      %v1791 = vpop.f32.mrb[0].mxu0
      %v1792 = vadd.f32 %v1538, %v1791
      %1793 = vmatprep.mubr.bf16.mxu0 %v1478
      %1794 = vmatmul.mubr.bf16.gmra.mrb[0].mxu0 %v1477
      %v1795 = vpop.f32.mrb[0].mxu0
      %v1796 = vadd.f32 %v1534, %v1795
      %v1797 = vpop.f32.mrb[0].mxu0
      %v1798 = vadd.f32 %v1538, %v1797
      %v1799 = vpop.f32.mrb[0].mxu0
      %v1800 = vadd.f32 %v1534, %v1799
      %v1801 = vpop.f32.mrb[0].mxu0
      %v1802 = vadd.f32 %v1538, %v1801
      %1803 = vmatprep.mubr.bf16.mxu0 %v1480
      %1804 = vmatmul.mubr.bf16.gmra.mrb[0].mxu0 %v1479
      %v1805 = vpop.f32.mrb[0].mxu0
      %v1806 = vadd.f32 %v1534, %v1805
      %v1807 = vpop.f32.mrb[0].mxu0
      %v1808 = vadd.f32 %v1538, %v1807
      %v1809 = vpop.f32.mrb[0].mxu0
      %v1810 = vadd.f32 %v1534, %v1809
      %v1811 = vpop.f32.mrb[0].mxu0
      %v1812 = vadd.f32 %v1538, %v1811
      %1813 = vmatprep.mubr.bf16.mxu0 %v1482
      %1814 = vmatmul.mubr.bf16.gmra.mrb[0].mxu0 %v1481
      %v1815 = vpop.f32.mrb[0].mxu0
      %v1816 = vadd.f32 %v1534, %v1815
      %v1817 = vpop.f32.mrb[0].mxu0
      %v1818 = vadd.f32 %v1538, %v1817
      %v1819 = vpop.f32.mrb[0].mxu0
      %v1820 = vadd.f32 %v1534, %v1819
      %v1821 = vpop.f32.mrb[0].mxu0
      %v1822 = vadd.f32 %v1538, %v1821
      %1823 = vmatprep.mubr.bf16.mxu0 %v1484
      %1824 = vmatmul.mubr.bf16.gmra.mrb[0].mxu0 %v1483
      %v1825 = vpop.f32.mrb[0].mxu0
      %v1826 = vadd.f32 %v1534, %v1825
      %v1827 = vpop.f32.mrb[0].mxu0
      %v1828 = vadd.f32 %v1538, %v1827
      %v1829 = vpop.f32.mrb[0].mxu0
      %v1830 = vadd.f32 %v1534, %v1829
      %v1831 = vpop.f32.mrb[0].mxu0
      %v1832 = vadd.f32 %v1538, %v1831
      %1833 = vmatprep.mubr.bf16.mxu0 %v1486
      %1834 = vmatmul.mubr.bf16.gmra.mrb[0].mxu0 %v1485
      %v1835 = vpop.f32.mrb[0].mxu0
      %v1836 = vadd.f32 %v1534, %v1835
      %v1837 = vpop.f32.mrb[0].mxu0
      %v1838 = vadd.f32 %v1538, %v1837
      %v1839 = vpop.f32.mrb[0].mxu0
      %v1840 = vadd.f32 %v1534, %v1839
      %v1841 = vpop.f32.mrb[0].mxu0
      %v1842 = vadd.f32 %v1538, %v1841
      %1843 = vmatprep.mubr.bf16.mxu0 %v1488
      %1844 = vmatmul.mubr.bf16.gmra.mrb[0].mxu0 %v1487
      %v1845 = vpop.f32.mrb[0].mxu0
      %v1846 = vadd.f32 %v1534, %v1845
      %v1847 = vpop.f32.mrb[0].mxu0
      %v1848 = vadd.f32 %v1538, %v1847
      %v1849 = vpop.f32.mrb[0].mxu0
      %v1850 = vadd.f32 %v1534, %v1849
      %v1851 = vpop.f32.mrb[0].mxu0
      %v1852 = vadd.f32 %v1538, %v1851
      %1853 = vmatprep.mubr.bf16.mxu0 %v1490
      %1854 = vmatmul.mubr.bf16.gmra.mrb[0].mxu0 %v1489
      %v1855 = vpop.f32.mrb[0].mxu0
      %v1856 = vadd.f32 %v1534, %v1855
      %v1857 = vpop.f32.mrb[0].mxu0
      %v1858 = vadd.f32 %v1538, %v1857
      %v1859 = vpop.f32.mrb[0].mxu0
      %v1860 = vadd.f32 %v1534, %v1859
      %v1861 = vpop.f32.mrb[0].mxu0
      %v1862 = vadd.f32 %v1538, %v1861
      %1863 = vmatprep.mubr.bf16.mxu0 %v1492
      %1864 = vmatmul.mubr.bf16.gmra.mrb[0].mxu0 %v1491
      %v1865 = vpop.f32.mrb[0].mxu0
      %v1866 = vadd.f32 %v1534, %v1865
      %v1867 = vpop.f32.mrb[0].mxu0
      %v1868 = vadd.f32 %v1538, %v1867
      %v1869 = vpop.f32.mrb[0].mxu0
      %v1870 = vadd.f32 %v1534, %v1869
      %v1871 = vpop.f32.mrb[0].mxu0
      %v1872 = vadd.f32 %v1538, %v1871
      %1873 = vmatprep.mubr.bf16.mxu0 %v1494
      %1874 = vmatmul.mubr.bf16.gmra.mrb[0].mxu0 %v1493
      %v1875 = vpop.f32.mrb[0].mxu0
      %v1876 = vadd.f32 %v1534, %v1875
      %v1877 = vpop.f32.mrb[0].mxu0
      %v1878 = vadd.f32 %v1538, %v1877
      %v1879 = vpop.f32.mrb[0].mxu0
      %v1880 = vadd.f32 %v1534, %v1879
      %v1881 = vpop.f32.mrb[0].mxu0
      %v1882 = vadd.f32 %v1538, %v1881
      %1883 = vmatprep.mubr.bf16.mxu0 %v1496
      %1884 = vmatmul.mubr.bf16.gmra.mrb[0].mxu0 %v1495
      %v1885 = vpop.f32.mrb[0].mxu0
      %v1886 = vadd.f32 %v1534, %v1885
      %v1887 = vpop.f32.mrb[0].mxu0
      %v1888 = vadd.f32 %v1538, %v1887
      %v1889 = vpop.f32.mrb[0].mxu0
      %v1890 = vadd.f32 %v1534, %v1889
      %v1891 = vpop.f32.mrb[0].mxu0
      %v1892 = vadd.f32 %v1538, %v1891
      %1893 = vdwg.mxu0
      %v1894 = vmax.f32 %v1736, 0.0
      %v1895 = vmax.f32 %v1738, 0.0
      %v1896 = vmax.f32 %v1740, 0.0
      %v1897 = vmax.f32 %v1742, 0.0
      %v1898 = vmax.f32 %v1746, 0.0
      %v1899 = vmax.f32 %v1748, 0.0
      %v1900 = vmax.f32 %v1750, 0.0
      %v1901 = vmax.f32 %v1752, 0.0
      %v1902 = vmax.f32 %v1756, 0.0
      %v1903 = vmax.f32 %v1758, 0.0
      %v1904 = vmax.f32 %v1760, 0.0
      %v1905 = vmax.f32 %v1762, 0.0
      %v1906 = vmax.f32 %v1766, 0.0
      %v1907 = vmax.f32 %v1768, 0.0
      %v1908 = vmax.f32 %v1770, 0.0
      %v1909 = vmax.f32 %v1772, 0.0
      %v1910 = vmax.f32 %v1776, 0.0
      %v1911 = vmax.f32 %v1778, 0.0
      %v1912 = vmax.f32 %v1780, 0.0
      %v1913 = vmax.f32 %v1782, 0.0
      %v1914 = vmax.f32 %v1786, 0.0
      %v1915 = vmax.f32 %v1788, 0.0
      %v1916 = vmax.f32 %v1790, 0.0
      %v1917 = vmax.f32 %v1792, 0.0
      %v1918 = vmax.f32 %v1796, 0.0
      %v1919 = vmax.f32 %v1798, 0.0
      %v1920 = vmax.f32 %v1800, 0.0
      %v1921 = vmax.f32 %v1802, 0.0
      %v1922 = vmax.f32 %v1806, 0.0
      %v1923 = vmax.f32 %v1808, 0.0
      %v1924 = vmax.f32 %v1810, 0.0
      %v1925 = vmax.f32 %v1812, 0.0
      %v1926 = vmax.f32 %v1816, 0.0
      %v1927 = vmax.f32 %v1818, 0.0
      %v1928 = vmax.f32 %v1820, 0.0
      %v1929 = vmax.f32 %v1822, 0.0
      %v1930 = vmax.f32 %v1826, 0.0
      %v1931 = vmax.f32 %v1828, 0.0
      %v1932 = vmax.f32 %v1830, 0.0
      %v1933 = vmax.f32 %v1832, 0.0
      %v1934 = vmax.f32 %v1836, 0.0
      %v1935 = vmax.f32 %v1838, 0.0
      %v1936 = vmax.f32 %v1840, 0.0
      %v1937 = vmax.f32 %v1842, 0.0
      %v1938 = vmax.f32 %v1846, 0.0
      %v1939 = vmax.f32 %v1848, 0.0
      %v1940 = vmax.f32 %v1850, 0.0
      %v1941 = vmax.f32 %v1852, 0.0
      %v1942 = vmax.f32 %v1856, 0.0
      %v1943 = vmax.f32 %v1858, 0.0
      %v1944 = vmax.f32 %v1860, 0.0
      %v1945 = vmax.f32 %v1862, 0.0
      %v1946 = vmax.f32 %v1866, 0.0
      %v1947 = vmax.f32 %v1868, 0.0
      %v1948 = vmax.f32 %v1870, 0.0
      %v1949 = vmax.f32 %v1872, 0.0
      %v1950 = vmax.f32 %v1876, 0.0
      %v1951 = vmax.f32 %v1878, 0.0
      %v1952 = vmax.f32 %v1880, 0.0
      %v1953 = vmax.f32 %v1882, 0.0
      %v1954 = vmax.f32 %v1886, 0.0
      %v1955 = vmax.f32 %v1888, 0.0
      %v1956 = vmax.f32 %v1890, 0.0
      %v1957 = vmax.f32 %v1892, 0.0
      %v1958 = vpack.c.bf16 %v1896, %v1894
      %v1959 = vpack.c.bf16 %v1897, %v1895
      %v1960 = vpack.c.bf16 %v1900, %v1898
      %v1961 = vpack.c.bf16 %v1901, %v1899
      %v1962 = vpack.c.bf16 %v1904, %v1902
      %v1963 = vpack.c.bf16 %v1905, %v1903
      %v1964 = vpack.c.bf16 %v1908, %v1906
      %v1965 = vpack.c.bf16 %v1909, %v1907
      %v1966 = vpack.c.bf16 %v1912, %v1910
      %v1967 = vpack.c.bf16 %v1913, %v1911
      %v1968 = vpack.c.bf16 %v1916, %v1914
      %v1969 = vpack.c.bf16 %v1917, %v1915
      %v1970 = vpack.c.bf16 %v1920, %v1918
      %v1971 = vpack.c.bf16 %v1921, %v1919
      %v1972 = vpack.c.bf16 %v1924, %v1922
      %v1973 = vpack.c.bf16 %v1925, %v1923
      %v1974 = vpack.c.bf16 %v1928, %v1926
      %v1975 = vpack.c.bf16 %v1929, %v1927
      %v1976 = vpack.c.bf16 %v1932, %v1930
      %v1977 = vpack.c.bf16 %v1933, %v1931
      %v1978 = vpack.c.bf16 %v1936, %v1934
      %v1979 = vpack.c.bf16 %v1937, %v1935
      %v1980 = vpack.c.bf16 %v1940, %v1938
      %v1981 = vpack.c.bf16 %v1941, %v1939
      %v1982 = vpack.c.bf16 %v1944, %v1942
      %v1983 = vpack.c.bf16 %v1945, %v1943
      %v1984 = vpack.c.bf16 %v1948, %v1946
      %v1985 = vpack.c.bf16 %v1949, %v1947
      %v1986 = vpack.c.bf16 %v1952, %v1950
      %v1987 = vpack.c.bf16 %v1953, %v1951
      %v1988 = vpack.c.bf16 %v1956, %v1954
      %v1989 = vpack.c.bf16 %v1957, %v1955
      %v1990 = vld [vmem:[%s7] sm:$0xf]
      %v1991 = vld [vmem:[%s7 + $0x4] sm:$0xf]
      %v1992 = vld [vmem:[%s7 + $0x8] sm:$0xf]
      %v1993 = vld [vmem:[%s7 + $0xc] sm:$0xf]
      %v1994 = vld [vmem:[%s7 + $0x10] sm:$0xf]
      %v1995 = vld [vmem:[%s7 + $0x14] sm:$0xf]
      %v1996 = vld [vmem:[%s7 + $0x18] sm:$0xf]
      %v1997 = vld [vmem:[%s7 + $0x1c] sm:$0xf]
      %v1998 = vld [vmem:[%s7 + $0x20] sm:$0xf]
      %v1999 = vld [vmem:[%s7 + $0x24] sm:$0xf]
      %v2000 = vld [vmem:[%s7 + $0x28] sm:$0xf]
      %v2001 = vld [vmem:[%s7 + $0x2c] sm:$0xf]
      %v2002 = vld [vmem:[%s7 + $0x30] sm:$0xf]
      %v2003 = vld [vmem:[%s7 + $0x34] sm:$0xf]
      %v2004 = vld [vmem:[%s7 + $0x38] sm:$0xf]
      %v2005 = vld [vmem:[%s7 + $0x3c] sm:$0xf]
      %v2006 = vld [vmem:[%s7 + $0x40] sm:$0xf]
      %v2007 = vld [vmem:[%s7 + $0x44] sm:$0xf]
      %v2008 = vld [vmem:[%s7 + $0x48] sm:$0xf]
      %v2009 = vld [vmem:[%s7 + $0x4c] sm:$0xf]
      %v2010 = vld [vmem:[%s7 + $0x50] sm:$0xf]
      %v2011 = vld [vmem:[%s7 + $0x54] sm:$0xf]
      %v2012 = vld [vmem:[%s7 + $0x58] sm:$0xf]
      %v2013 = vld [vmem:[%s7 + $0x5c] sm:$0xf]
      %v2014 = vld [vmem:[%s7 + $0x60] sm:$0xf]
      %v2015 = vld [vmem:[%s7 + $0x64] sm:$0xf]
      %v2016 = vld [vmem:[%s7 + $0x68] sm:$0xf]
      %v2017 = vld [vmem:[%s7 + $0x6c] sm:$0xf]
      %v2018 = vld [vmem:[%s7 + $0x70] sm:$0xf]
      %v2019 = vld [vmem:[%s7 + $0x74] sm:$0xf]
      %v2020 = vld [vmem:[%s7 + $0x78] sm:$0xf]
      %v2021 = vld [vmem:[%s7 + $0x7c] sm:$0xf]
      %v2022 = vld [vmem:[%s8] sm:$0x1]
      %v2024 = vlaneseq
      %v2025 = vshrl.u32 %v2024, 7
      %v2026 = vsub.s32 0, %v2025
      %v2027 = vrot.slane %v2022, %v2026
      %v2061 = vunpack.c.l.b16 %v1990
      %v2062 = vunpack.c.l.b16 %v1991
      %v2063 = vunpack.c.l.b16 %v1992
      %v2064 = vunpack.c.l.b16 %v1993
      %v2065 = vunpack.c.l.b16 %v1994
      %v2066 = vunpack.c.l.b16 %v1995
      %v2067 = vunpack.c.l.b16 %v1996
      %v2068 = vunpack.c.l.b16 %v1997
      %v2069 = vunpack.c.l.b16 %v1998
      %v2070 = vunpack.c.l.b16 %v1999
      %v2071 = vunpack.c.l.b16 %v2000
      %v2072 = vunpack.c.l.b16 %v2001
      %v2073 = vunpack.c.l.b16 %v2002
      %v2074 = vunpack.c.l.b16 %v2003
      %v2075 = vunpack.c.l.b16 %v2004
      %v2076 = vunpack.c.l.b16 %v2005
      %v2077 = vunpack.c.l.b16 %v2006
      %v2078 = vunpack.c.l.b16 %v2007
      %v2079 = vunpack.c.l.b16 %v2008
      %v2080 = vunpack.c.l.b16 %v2009
      %v2081 = vunpack.c.l.b16 %v2010
      %v2082 = vunpack.c.l.b16 %v2011
      %v2083 = vunpack.c.l.b16 %v2012
      %v2084 = vunpack.c.l.b16 %v2013
      %v2085 = vunpack.c.l.b16 %v2014
      %v2086 = vunpack.c.l.b16 %v2015
      %v2087 = vunpack.c.l.b16 %v2016
      %v2088 = vunpack.c.l.b16 %v2017
      %v2089 = vunpack.c.l.b16 %v2018
      %v2090 = vunpack.c.l.b16 %v2019
      %v2091 = vunpack.c.l.b16 %v2020
      %v2092 = vunpack.c.l.b16 %v2021
      %v2093 = vpack.c.b16 %v2062, %v2061
      %v2094 = vpack.c.b16 %v2064, %v2063
      %v2095 = vpack.c.b16 %v2066, %v2065
      %v2096 = vpack.c.b16 %v2068, %v2067
      %v2097 = vpack.c.b16 %v2070, %v2069
      %v2098 = vpack.c.b16 %v2072, %v2071
      %v2099 = vpack.c.b16 %v2074, %v2073
      %v2100 = vpack.c.b16 %v2076, %v2075
      %v2101 = vpack.c.b16 %v2078, %v2077
      %v2102 = vpack.c.b16 %v2080, %v2079
      %v2103 = vpack.c.b16 %v2082, %v2081
      %v2104 = vpack.c.b16 %v2084, %v2083
      %v2105 = vpack.c.b16 %v2086, %v2085
      %v2106 = vpack.c.b16 %v2088, %v2087
      %v2107 = vpack.c.b16 %v2090, %v2089
      %v2108 = vpack.c.b16 %v2092, %v2091
      %2125 = vmatprep.subr.bf16.mxu0 0
      %2126 = vmatpush1.bf16.msra.mxu0 %v2093
      %2127 = vmatprep.subr.bf16.mxu0 0
      %2128 = vmatpush1.bf16.msra.mxu0 %v2094
      %2129 = vmatprep.subr.bf16.mxu0 0
      %2130 = vmatpush1.bf16.msra.mxu0 %v2095
      %2131 = vmatprep.subr.bf16.mxu0 0
      %2132 = vmatpush1.bf16.msra.mxu0 %v2096
      %2133 = vmatprep.subr.bf16.mxu0 0
      %2134 = vmatpush1.bf16.msra.mxu0 %v2097
      %2135 = vmatprep.subr.bf16.mxu0 0
      %2136 = vmatpush1.bf16.msra.mxu0 %v2098
      %2137 = vmatprep.subr.bf16.mxu0 0
      %2138 = vmatpush1.bf16.msra.mxu0 %v2099
      %2139 = vmatprep.subr.bf16.mxu0 0
      %2140 = vmatpush1.bf16.msra.mxu0 %v2100
      %2141 = vmatprep.subr.bf16.mxu0 0
      %2142 = vmatpush1.bf16.msra.mxu0 %v2101
      %2143 = vmatprep.subr.bf16.mxu0 0
      %2144 = vmatpush1.bf16.msra.mxu0 %v2102
      %2145 = vmatprep.subr.bf16.mxu0 0
      %2146 = vmatpush1.bf16.msra.mxu0 %v2103
      %2147 = vmatprep.subr.bf16.mxu0 0
      %2148 = vmatpush1.bf16.msra.mxu0 %v2104
      %2149 = vmatprep.subr.bf16.mxu0 0
      %2150 = vmatpush1.bf16.msra.mxu0 %v2105
      %2151 = vmatprep.subr.bf16.mxu0 0
      %2152 = vmatpush1.bf16.msra.mxu0 %v2106
      %2153 = vmatprep.subr.bf16.mxu0 0
      %2154 = vmatpush1.bf16.msra.mxu0 %v2107
      %2155 = vmatprep.subr.bf16.mxu0 0
      %2156 = vmatpush1.bf16.msra.mxu0 %v2108
      %2157 = vmatprep.mubr.bf16.mxu0 %v1959
      %2158 = vmatmul.mubr.bf16.gmra.mrb[0].mxu0 %v1958
      %v2159 = vpop.f32.mrb[0].mxu0
      %v2160 = vadd.f32 %v2027, %v2159
      %v2161 = vpop.f32.mrb[0].mxu0
      %v2162 = vpop.f32.mrb[0].mxu0
      %v2163 = vadd.f32 %v2027, %v2162
      %v2164 = vpop.f32.mrb[0].mxu0
      %2165 = vmatprep.mubr.bf16.mxu0 %v1961
      %2166 = vmatmul.mubr.bf16.gmra.mrb[0].mxu0 %v1960
      %v2167 = vpop.f32.mrb[0].mxu0
      %v2168 = vadd.f32 %v2027, %v2167
      %v2169 = vpop.f32.mrb[0].mxu0
      %v2170 = vpop.f32.mrb[0].mxu0
      %v2171 = vadd.f32 %v2027, %v2170
      %v2172 = vpop.f32.mrb[0].mxu0
      %2173 = vmatprep.mubr.bf16.mxu0 %v1963
      %2174 = vmatmul.mubr.bf16.gmra.mrb[0].mxu0 %v1962
      %v2175 = vpop.f32.mrb[0].mxu0
      %v2176 = vadd.f32 %v2027, %v2175
      %v2177 = vpop.f32.mrb[0].mxu0
      %v2178 = vpop.f32.mrb[0].mxu0
      %v2179 = vadd.f32 %v2027, %v2178
      %v2180 = vpop.f32.mrb[0].mxu0
      %2181 = vmatprep.mubr.bf16.mxu0 %v1965
      %2182 = vmatmul.mubr.bf16.gmra.mrb[0].mxu0 %v1964
      %v2183 = vpop.f32.mrb[0].mxu0
      %v2184 = vadd.f32 %v2027, %v2183
      %v2185 = vpop.f32.mrb[0].mxu0
      %v2186 = vpop.f32.mrb[0].mxu0
      %v2187 = vadd.f32 %v2027, %v2186
      %v2188 = vpop.f32.mrb[0].mxu0
      %2189 = vmatprep.mubr.bf16.mxu0 %v1967
      %2190 = vmatmul.mubr.bf16.gmra.mrb[0].mxu0 %v1966
      %v2191 = vpop.f32.mrb[0].mxu0
      %v2192 = vadd.f32 %v2027, %v2191
      %v2193 = vpop.f32.mrb[0].mxu0
      %v2194 = vpop.f32.mrb[0].mxu0
      %v2195 = vadd.f32 %v2027, %v2194
      %v2196 = vpop.f32.mrb[0].mxu0
      %2197 = vmatprep.mubr.bf16.mxu0 %v1969
      %2198 = vmatmul.mubr.bf16.gmra.mrb[0].mxu0 %v1968
      %v2199 = vpop.f32.mrb[0].mxu0
      %v2200 = vadd.f32 %v2027, %v2199
      %v2201 = vpop.f32.mrb[0].mxu0
      %v2202 = vpop.f32.mrb[0].mxu0
      %v2203 = vadd.f32 %v2027, %v2202
      %v2204 = vpop.f32.mrb[0].mxu0
      %2205 = vmatprep.mubr.bf16.mxu0 %v1971
      %2206 = vmatmul.mubr.bf16.gmra.mrb[0].mxu0 %v1970
      %v2207 = vpop.f32.mrb[0].mxu0
      %v2208 = vadd.f32 %v2027, %v2207
      %v2209 = vpop.f32.mrb[0].mxu0
      %v2210 = vpop.f32.mrb[0].mxu0
      %v2211 = vadd.f32 %v2027, %v2210
      %v2212 = vpop.f32.mrb[0].mxu0
      %2213 = vmatprep.mubr.bf16.mxu0 %v1973
      %2214 = vmatmul.mubr.bf16.gmra.mrb[0].mxu0 %v1972
      %v2215 = vpop.f32.mrb[0].mxu0
      %v2216 = vadd.f32 %v2027, %v2215
      %v2217 = vpop.f32.mrb[0].mxu0
      %v2218 = vpop.f32.mrb[0].mxu0
      %v2219 = vadd.f32 %v2027, %v2218
      %v2220 = vpop.f32.mrb[0].mxu0
      %2221 = vmatprep.mubr.bf16.mxu0 %v1975
      %2222 = vmatmul.mubr.bf16.gmra.mrb[0].mxu0 %v1974
      %v2223 = vpop.f32.mrb[0].mxu0
      %v2224 = vadd.f32 %v2027, %v2223
      %v2225 = vpop.f32.mrb[0].mxu0
      %v2226 = vpop.f32.mrb[0].mxu0
      %v2227 = vadd.f32 %v2027, %v2226
      %v2228 = vpop.f32.mrb[0].mxu0
      %2229 = vmatprep.mubr.bf16.mxu0 %v1977
      %2230 = vmatmul.mubr.bf16.gmra.mrb[0].mxu0 %v1976
      %v2231 = vpop.f32.mrb[0].mxu0
      %v2232 = vadd.f32 %v2027, %v2231
      %v2233 = vpop.f32.mrb[0].mxu0
      %v2234 = vpop.f32.mrb[0].mxu0
      %v2235 = vadd.f32 %v2027, %v2234
      %v2236 = vpop.f32.mrb[0].mxu0
      %2237 = vmatprep.mubr.bf16.mxu0 %v1979
      %2238 = vmatmul.mubr.bf16.gmra.mrb[0].mxu0 %v1978
      %v2239 = vpop.f32.mrb[0].mxu0
      %v2240 = vadd.f32 %v2027, %v2239
      %v2241 = vpop.f32.mrb[0].mxu0
      %v2242 = vpop.f32.mrb[0].mxu0
      %v2243 = vadd.f32 %v2027, %v2242
      %v2244 = vpop.f32.mrb[0].mxu0
      %2245 = vmatprep.mubr.bf16.mxu0 %v1981
      %2246 = vmatmul.mubr.bf16.gmra.mrb[0].mxu0 %v1980
      %v2247 = vpop.f32.mrb[0].mxu0
      %v2248 = vadd.f32 %v2027, %v2247
      %v2249 = vpop.f32.mrb[0].mxu0
      %v2250 = vpop.f32.mrb[0].mxu0
      %v2251 = vadd.f32 %v2027, %v2250
      %v2252 = vpop.f32.mrb[0].mxu0
      %2253 = vmatprep.mubr.bf16.mxu0 %v1983
      %2254 = vmatmul.mubr.bf16.gmra.mrb[0].mxu0 %v1982
      %v2255 = vpop.f32.mrb[0].mxu0
      %v2256 = vadd.f32 %v2027, %v2255
      %v2257 = vpop.f32.mrb[0].mxu0
      %v2258 = vpop.f32.mrb[0].mxu0
      %v2259 = vadd.f32 %v2027, %v2258
      %v2260 = vpop.f32.mrb[0].mxu0
      %2261 = vmatprep.mubr.bf16.mxu0 %v1985
      %2262 = vmatmul.mubr.bf16.gmra.mrb[0].mxu0 %v1984
      %v2263 = vpop.f32.mrb[0].mxu0
      %v2264 = vadd.f32 %v2027, %v2263
      %v2265 = vpop.f32.mrb[0].mxu0
      %v2266 = vpop.f32.mrb[0].mxu0
      %v2267 = vadd.f32 %v2027, %v2266
      %v2268 = vpop.f32.mrb[0].mxu0
      %2269 = vmatprep.mubr.bf16.mxu0 %v1987
      %2270 = vmatmul.mubr.bf16.gmra.mrb[0].mxu0 %v1986
      %v2271 = vpop.f32.mrb[0].mxu0
      %v2272 = vadd.f32 %v2027, %v2271
      %v2273 = vpop.f32.mrb[0].mxu0
      %v2274 = vpop.f32.mrb[0].mxu0
      %v2275 = vadd.f32 %v2027, %v2274
      %v2276 = vpop.f32.mrb[0].mxu0
      %2277 = vmatprep.mubr.bf16.mxu0 %v1989
      %2278 = vmatmul.mubr.bf16.gmra.mrb[0].mxu0 %v1988
      %v2279 = vpop.f32.mrb[0].mxu0
      %v2280 = vadd.f32 %v2027, %v2279
      %v2281 = vpop.f32.mrb[0].mxu0
      %v2282 = vpop.f32.mrb[0].mxu0
      %v2283 = vadd.f32 %v2027, %v2282
      %v2284 = vpop.f32.mrb[0].mxu0
      %2285 = vdwg.mxu0
      %v2286 = vmax.f32 %v2160, 0.0
      %v2287 = vmax.f32 %v2163, 0.0
      %v2288 = vmax.f32 %v2168, 0.0
      %v2289 = vmax.f32 %v2171, 0.0
      %v2290 = vmax.f32 %v2176, 0.0
      %v2291 = vmax.f32 %v2179, 0.0
      %v2292 = vmax.f32 %v2184, 0.0
      %v2293 = vmax.f32 %v2187, 0.0
      %v2294 = vmax.f32 %v2192, 0.0
      %v2295 = vmax.f32 %v2195, 0.0
      %v2296 = vmax.f32 %v2200, 0.0
      %v2297 = vmax.f32 %v2203, 0.0
      %v2298 = vmax.f32 %v2208, 0.0
      %v2299 = vmax.f32 %v2211, 0.0
      %v2300 = vmax.f32 %v2216, 0.0
      %v2301 = vmax.f32 %v2219, 0.0
      %v2302 = vmax.f32 %v2224, 0.0
      %v2303 = vmax.f32 %v2227, 0.0
      %v2304 = vmax.f32 %v2232, 0.0
      %v2305 = vmax.f32 %v2235, 0.0
      %v2306 = vmax.f32 %v2240, 0.0
      %v2307 = vmax.f32 %v2243, 0.0
      %v2308 = vmax.f32 %v2248, 0.0
      %v2309 = vmax.f32 %v2251, 0.0
      %v2310 = vmax.f32 %v2256, 0.0
      %v2311 = vmax.f32 %v2259, 0.0
      %v2312 = vmax.f32 %v2264, 0.0
      %v2313 = vmax.f32 %v2267, 0.0
      %v2314 = vmax.f32 %v2272, 0.0
      %v2315 = vmax.f32 %v2275, 0.0
      %v2316 = vmax.f32 %v2280, 0.0
      %v2317 = vmax.f32 %v2283, 0.0
      %v2318 = vpack.c.bf16 %v2287, %v2286
      %v2319 = vpack.c.bf16 %v2289, %v2288
      %v2320 = vpack.c.bf16 %v2291, %v2290
      %v2321 = vpack.c.bf16 %v2293, %v2292
      %v2322 = vpack.c.bf16 %v2295, %v2294
      %v2323 = vpack.c.bf16 %v2297, %v2296
      %v2324 = vpack.c.bf16 %v2299, %v2298
      %v2325 = vpack.c.bf16 %v2301, %v2300
      %v2326 = vpack.c.bf16 %v2303, %v2302
      %v2327 = vpack.c.bf16 %v2305, %v2304
      %v2328 = vpack.c.bf16 %v2307, %v2306
      %v2329 = vpack.c.bf16 %v2309, %v2308
      %v2330 = vpack.c.bf16 %v2311, %v2310
      %v2331 = vpack.c.bf16 %v2313, %v2312
      %v2332 = vpack.c.bf16 %v2315, %v2314
      %v2333 = vpack.c.bf16 %v2317, %v2316
      %v2334 = vld [vmem:[%s9] sm:$0xf]
      %v2335 = vld [vmem:[%s9 + $0x4] sm:$0xf]
      %v2336 = vld [vmem:[%s9 + $0x8] sm:$0xf]
      %v2337 = vld [vmem:[%s9 + $0xc] sm:$0xf]
      %v2338 = vld [vmem:[%s9 + $0x10] sm:$0xf]
      %v2339 = vld [vmem:[%s9 + $0x14] sm:$0xf]
      %v2340 = vld [vmem:[%s9 + $0x18] sm:$0xf]
      %v2341 = vld [vmem:[%s9 + $0x1c] sm:$0xf]
      %v2342 = vld [vmem:[%s9 + $0x20] sm:$0xf]
      %v2343 = vld [vmem:[%s9 + $0x24] sm:$0xf]
      %v2344 = vld [vmem:[%s9 + $0x28] sm:$0xf]
      %v2345 = vld [vmem:[%s9 + $0x2c] sm:$0xf]
      %v2346 = vld [vmem:[%s9 + $0x30] sm:$0xf]
      %v2347 = vld [vmem:[%s9 + $0x34] sm:$0xf]
      %v2348 = vld [vmem:[%s9 + $0x38] sm:$0xf]
      %v2349 = vld [vmem:[%s9 + $0x3c] sm:$0xf]
      %v2350 = vld [vmem:[%s10] sm:$0x1]
      %v2352 = vlaneseq
      %v2353 = vshrl.u32 %v2352, 7
      %v2354 = vsub.s32 0, %v2353
      %v2355 = vrot.slane %v2350, %v2354
      %v2373 = vunpack.c.l.b16 %v2334
      %v2374 = vunpack.c.l.b16 %v2335
      %v2375 = vunpack.c.l.b16 %v2336
      %v2376 = vunpack.c.l.b16 %v2337
      %v2377 = vunpack.c.l.b16 %v2338
      %v2378 = vunpack.c.l.b16 %v2339
      %v2379 = vunpack.c.l.b16 %v2340
      %v2380 = vunpack.c.l.b16 %v2341
      %v2381 = vunpack.c.l.b16 %v2342
      %v2382 = vunpack.c.l.b16 %v2343
      %v2383 = vunpack.c.l.b16 %v2344
      %v2384 = vunpack.c.l.b16 %v2345
      %v2385 = vunpack.c.l.b16 %v2346
      %v2386 = vunpack.c.l.b16 %v2347
      %v2387 = vunpack.c.l.b16 %v2348
      %v2388 = vunpack.c.l.b16 %v2349
      %v2389 = vpack.c.b16 %v2374, %v2373
      %v2390 = vpack.c.b16 %v2376, %v2375
      %v2391 = vpack.c.b16 %v2378, %v2377
      %v2392 = vpack.c.b16 %v2380, %v2379
      %v2393 = vpack.c.b16 %v2382, %v2381
      %v2394 = vpack.c.b16 %v2384, %v2383
      %v2395 = vpack.c.b16 %v2386, %v2385
      %v2396 = vpack.c.b16 %v2388, %v2387
      %2405 = vmatprep.subr.bf16.mxu0 0
      %2406 = vmatpush1.bf16.msra.mxu0 %v2389
      %2407 = vmatprep.subr.bf16.mxu0 0
      %2408 = vmatpush1.bf16.msra.mxu0 %v2390
      %2409 = vmatprep.subr.bf16.mxu0 0
      %2410 = vmatpush1.bf16.msra.mxu0 %v2391
      %2411 = vmatprep.subr.bf16.mxu0 0
      %2412 = vmatpush1.bf16.msra.mxu0 %v2392
      %2413 = vmatprep.subr.bf16.mxu0 0
      %2414 = vmatpush1.bf16.msra.mxu0 %v2393
      %2415 = vmatprep.subr.bf16.mxu0 0
      %2416 = vmatpush1.bf16.msra.mxu0 %v2394
      %2417 = vmatprep.subr.bf16.mxu0 0
      %2418 = vmatpush1.bf16.msra.mxu0 %v2395
      %2419 = vmatprep.subr.bf16.mxu0 0
      %2420 = vmatpush1.bf16.msra.mxu0 %v2396
      %2421 = vmatprep.subr.bf16.mxu0 0
      %2422 = vmatpush1.bf16.msra.mxu0 0
      %2423 = vmatprep.subr.bf16.mxu0 0
      %2424 = vmatpush1.bf16.msra.mxu0 0
      %2425 = vmatprep.subr.bf16.mxu0 0
      %2426 = vmatpush1.bf16.msra.mxu0 0
      %2427 = vmatprep.subr.bf16.mxu0 0
      %2428 = vmatpush1.bf16.msra.mxu0 0
      %2429 = vmatprep.subr.bf16.mxu0 0
      %2430 = vmatpush1.bf16.msra.mxu0 0
      %2431 = vmatprep.subr.bf16.mxu0 0
      %2432 = vmatpush1.bf16.msra.mxu0 0
      %2433 = vmatprep.subr.bf16.mxu0 0
      %2434 = vmatpush1.bf16.msra.mxu0 0
      %2435 = vmatprep.subr.bf16.mxu0 0
      %2436 = vmatpush1.bf16.msra.mxu0 0
      %2437 = vmatprep.mubr.bf16.mxu0 0
      %2438 = vmatmul.mubr.bf16.gmra.mrb[0].mxu0 %v2318
      %v2439 = vpop.f32.mrb[0].mxu0
      %v2440 = vadd.f32 %v2355, %v2439
      %v2441 = vpop.f32.mrb[0].mxu0
      %v2442 = vpop.f32.mrb[0].mxu0
      %v2443 = vadd.f32 %v2355, %v2442
      %v2444 = vpop.f32.mrb[0].mxu0
      %2445 = vmatprep.mubr.bf16.mxu0 0
      %2446 = vmatmul.mubr.bf16.gmra.mrb[0].mxu0 %v2319
      %v2447 = vpop.f32.mrb[0].mxu0
      %v2448 = vadd.f32 %v2355, %v2447
      %v2449 = vpop.f32.mrb[0].mxu0
      %v2450 = vpop.f32.mrb[0].mxu0
      %v2451 = vadd.f32 %v2355, %v2450
      %v2452 = vpop.f32.mrb[0].mxu0
      %2453 = vmatprep.mubr.bf16.mxu0 0
      %2454 = vmatmul.mubr.bf16.gmra.mrb[0].mxu0 %v2320
      %v2455 = vpop.f32.mrb[0].mxu0
      %v2456 = vadd.f32 %v2355, %v2455
      %v2457 = vpop.f32.mrb[0].mxu0
      %v2458 = vpop.f32.mrb[0].mxu0
      %v2459 = vadd.f32 %v2355, %v2458
      %v2460 = vpop.f32.mrb[0].mxu0
      %2461 = vmatprep.mubr.bf16.mxu0 0
      %2462 = vmatmul.mubr.bf16.gmra.mrb[0].mxu0 %v2321
      %v2463 = vpop.f32.mrb[0].mxu0
      %v2464 = vadd.f32 %v2355, %v2463
      %v2465 = vpop.f32.mrb[0].mxu0
      %v2466 = vpop.f32.mrb[0].mxu0
      %v2467 = vadd.f32 %v2355, %v2466
      %v2468 = vpop.f32.mrb[0].mxu0
      %2469 = vmatprep.mubr.bf16.mxu0 0
      %2470 = vmatmul.mubr.bf16.gmra.mrb[0].mxu0 %v2322
      %v2471 = vpop.f32.mrb[0].mxu0
      %v2472 = vadd.f32 %v2355, %v2471
      %v2473 = vpop.f32.mrb[0].mxu0
      %v2474 = vpop.f32.mrb[0].mxu0
      %v2475 = vadd.f32 %v2355, %v2474
      %v2476 = vpop.f32.mrb[0].mxu0
      %2477 = vmatprep.mubr.bf16.mxu0 0
      %2478 = vmatmul.mubr.bf16.gmra.mrb[0].mxu0 %v2323
      %v2479 = vpop.f32.mrb[0].mxu0
      %v2480 = vadd.f32 %v2355, %v2479
      %v2481 = vpop.f32.mrb[0].mxu0
      %v2482 = vpop.f32.mrb[0].mxu0
      %v2483 = vadd.f32 %v2355, %v2482
      %v2484 = vpop.f32.mrb[0].mxu0
      %2485 = vmatprep.mubr.bf16.mxu0 0
      %2486 = vmatmul.mubr.bf16.gmra.mrb[0].mxu0 %v2324
      %v2487 = vpop.f32.mrb[0].mxu0
      %v2488 = vadd.f32 %v2355, %v2487
      %v2489 = vpop.f32.mrb[0].mxu0
      %v2490 = vpop.f32.mrb[0].mxu0
      %v2491 = vadd.f32 %v2355, %v2490
      %v2492 = vpop.f32.mrb[0].mxu0
      %2493 = vmatprep.mubr.bf16.mxu0 0
      %2494 = vmatmul.mubr.bf16.gmra.mrb[0].mxu0 %v2325
      %v2495 = vpop.f32.mrb[0].mxu0
      %v2496 = vadd.f32 %v2355, %v2495
      %v2497 = vpop.f32.mrb[0].mxu0
      %v2498 = vpop.f32.mrb[0].mxu0
      %v2499 = vadd.f32 %v2355, %v2498
      %v2500 = vpop.f32.mrb[0].mxu0
      %2501 = vmatprep.mubr.bf16.mxu0 0
      %2502 = vmatmul.mubr.bf16.gmra.mrb[0].mxu0 %v2326
      %v2503 = vpop.f32.mrb[0].mxu0
      %v2504 = vadd.f32 %v2355, %v2503
      %v2505 = vpop.f32.mrb[0].mxu0
      %v2506 = vpop.f32.mrb[0].mxu0
      %v2507 = vadd.f32 %v2355, %v2506
      %v2508 = vpop.f32.mrb[0].mxu0
      %2509 = vmatprep.mubr.bf16.mxu0 0
      %2510 = vmatmul.mubr.bf16.gmra.mrb[0].mxu0 %v2327
      %v2511 = vpop.f32.mrb[0].mxu0
      %v2512 = vadd.f32 %v2355, %v2511
      %v2513 = vpop.f32.mrb[0].mxu0
      %v2514 = vpop.f32.mrb[0].mxu0
      %v2515 = vadd.f32 %v2355, %v2514
      %v2516 = vpop.f32.mrb[0].mxu0
      %2517 = vmatprep.mubr.bf16.mxu0 0
      %2518 = vmatmul.mubr.bf16.gmra.mrb[0].mxu0 %v2328
      %v2519 = vpop.f32.mrb[0].mxu0
      %v2520 = vadd.f32 %v2355, %v2519
      %v2521 = vpop.f32.mrb[0].mxu0
      %v2522 = vpop.f32.mrb[0].mxu0
      %v2523 = vadd.f32 %v2355, %v2522
      %v2524 = vpop.f32.mrb[0].mxu0
      %2525 = vmatprep.mubr.bf16.mxu0 0
      %2526 = vmatmul.mubr.bf16.gmra.mrb[0].mxu0 %v2329
      %v2527 = vpop.f32.mrb[0].mxu0
      %v2528 = vadd.f32 %v2355, %v2527
      %v2529 = vpop.f32.mrb[0].mxu0
      %v2530 = vpop.f32.mrb[0].mxu0
      %v2531 = vadd.f32 %v2355, %v2530
      %v2532 = vpop.f32.mrb[0].mxu0
      %2533 = vmatprep.mubr.bf16.mxu0 0
      %2534 = vmatmul.mubr.bf16.gmra.mrb[0].mxu0 %v2330
      %v2535 = vpop.f32.mrb[0].mxu0
      %v2536 = vadd.f32 %v2355, %v2535
      %v2537 = vpop.f32.mrb[0].mxu0
      %v2538 = vpop.f32.mrb[0].mxu0
      %v2539 = vadd.f32 %v2355, %v2538
      %v2540 = vpop.f32.mrb[0].mxu0
      %2541 = vmatprep.mubr.bf16.mxu0 0
      %2542 = vmatmul.mubr.bf16.gmra.mrb[0].mxu0 %v2331
      %v2543 = vpop.f32.mrb[0].mxu0
      %v2544 = vadd.f32 %v2355, %v2543
      %v2545 = vpop.f32.mrb[0].mxu0
      %v2546 = vpop.f32.mrb[0].mxu0
      %v2547 = vadd.f32 %v2355, %v2546
      %v2548 = vpop.f32.mrb[0].mxu0
      %2549 = vmatprep.mubr.bf16.mxu0 0
      %2550 = vmatmul.mubr.bf16.gmra.mrb[0].mxu0 %v2332
      %v2551 = vpop.f32.mrb[0].mxu0
      %v2552 = vadd.f32 %v2355, %v2551
      %v2553 = vpop.f32.mrb[0].mxu0
      %v2554 = vpop.f32.mrb[0].mxu0
      %v2555 = vadd.f32 %v2355, %v2554
      %v2556 = vpop.f32.mrb[0].mxu0
      %2557 = vmatprep.mubr.bf16.mxu0 0
      %2558 = vmatmul.mubr.bf16.gmra.mrb[0].mxu0 %v2333
      %v2559 = vpop.f32.mrb[0].mxu0
      %v2560 = vadd.f32 %v2355, %v2559
      %v2561 = vpop.f32.mrb[0].mxu0
      %v2562 = vpop.f32.mrb[0].mxu0
      %v2563 = vadd.f32 %v2355, %v2562
      %v2564 = vpop.f32.mrb[0].mxu0
      %2565 = vdwg.mxu0
      %v2566 = vmax.f32 %v2440, 0.0
      %v2567 = vmax.f32 %v2443, 0.0
      %v2568 = vmax.f32 %v2448, 0.0
      %v2569 = vmax.f32 %v2451, 0.0
      %v2570 = vmax.f32 %v2456, 0.0
      %v2571 = vmax.f32 %v2459, 0.0
      %v2572 = vmax.f32 %v2464, 0.0
      %v2573 = vmax.f32 %v2467, 0.0
      %v2574 = vmax.f32 %v2472, 0.0
      %v2575 = vmax.f32 %v2475, 0.0
      %v2576 = vmax.f32 %v2480, 0.0
      %v2577 = vmax.f32 %v2483, 0.0
      %v2578 = vmax.f32 %v2488, 0.0
      %v2579 = vmax.f32 %v2491, 0.0
      %v2580 = vmax.f32 %v2496, 0.0
      %v2581 = vmax.f32 %v2499, 0.0
      %v2582 = vmax.f32 %v2504, 0.0
      %v2583 = vmax.f32 %v2507, 0.0
      %v2584 = vmax.f32 %v2512, 0.0
      %v2585 = vmax.f32 %v2515, 0.0
      %v2586 = vmax.f32 %v2520, 0.0
      %v2587 = vmax.f32 %v2523, 0.0
      %v2588 = vmax.f32 %v2528, 0.0
      %v2589 = vmax.f32 %v2531, 0.0
      %v2590 = vmax.f32 %v2536, 0.0
      %v2591 = vmax.f32 %v2539, 0.0
      %v2592 = vmax.f32 %v2544, 0.0
      %v2593 = vmax.f32 %v2547, 0.0
      %v2594 = vmax.f32 %v2552, 0.0
      %v2595 = vmax.f32 %v2555, 0.0
      %v2596 = vmax.f32 %v2560, 0.0
      %v2597 = vmax.f32 %v2563, 0.0
      %v2598 = vpack.c.bf16 %v2567, %v2566
      %v2599 = vpack.c.bf16 %v2569, %v2568
      %v2600 = vpack.c.bf16 %v2571, %v2570
      %v2601 = vpack.c.bf16 %v2573, %v2572
      %v2602 = vpack.c.bf16 %v2575, %v2574
      %v2603 = vpack.c.bf16 %v2577, %v2576
      %v2604 = vpack.c.bf16 %v2579, %v2578
      %v2605 = vpack.c.bf16 %v2581, %v2580
      %v2606 = vpack.c.bf16 %v2583, %v2582
      %v2607 = vpack.c.bf16 %v2585, %v2584
      %v2608 = vpack.c.bf16 %v2587, %v2586
      %v2609 = vpack.c.bf16 %v2589, %v2588
      %v2610 = vpack.c.bf16 %v2591, %v2590
      %v2611 = vpack.c.bf16 %v2593, %v2592
      %v2612 = vpack.c.bf16 %v2595, %v2594
      %v2613 = vpack.c.bf16 %v2597, %v2596
      %v2614 = vld [vmem:[%s11] sm:$0xf]
      %v2615 = vld [vmem:[%s11 + $0x4] sm:$0xf]
      %v2616 = vld [vmem:[%s11 + $0x8] sm:$0xf]
      %v2617 = vld [vmem:[%s11 + $0xc] sm:$0xf]
      %v2618 = vld [vmem:[%s11 + $0x10] sm:$0xf]
      %v2619 = vld [vmem:[%s11 + $0x14] sm:$0xf]
      %v2620 = vld [vmem:[%s11 + $0x18] sm:$0xf]
      %v2621 = vld [vmem:[%s11 + $0x1c] sm:$0xf]
      %v2622 = vld [vmem:[%s11 + $0x20] sm:$0xf]
      %v2623 = vld [vmem:[%s11 + $0x24] sm:$0xf]
      %v2624 = vld [vmem:[%s11 + $0x28] sm:$0xf]
      %v2625 = vld [vmem:[%s11 + $0x2c] sm:$0xf]
      %v2626 = vld [vmem:[%s11 + $0x30] sm:$0xf]
      %v2627 = vld [vmem:[%s11 + $0x34] sm:$0xf]
      %v2628 = vld [vmem:[%s11 + $0x38] sm:$0xf]
      %v2629 = vld [vmem:[%s11 + $0x3c] sm:$0xf]
      %v2630 = vld [vmem:[%s12] sm:$0x1]
      %v2632 = vlaneseq
      %v2633 = vshrl.u32 %v2632, 7
      %v2634 = vsub.s32 0, %v2633
      %v2635 = vrot.slane %v2630, %v2634
      %v2653 = vunpack.c.l.b16 %v2614
      %v2654 = vunpack.c.l.b16 %v2615
      %v2655 = vunpack.c.l.b16 %v2616
      %v2656 = vunpack.c.l.b16 %v2617
      %v2657 = vunpack.c.l.b16 %v2618
      %v2658 = vunpack.c.l.b16 %v2619
      %v2659 = vunpack.c.l.b16 %v2620
      %v2660 = vunpack.c.l.b16 %v2621
      %v2661 = vunpack.c.l.b16 %v2622
      %v2662 = vunpack.c.l.b16 %v2623
      %v2663 = vunpack.c.l.b16 %v2624
      %v2664 = vunpack.c.l.b16 %v2625
      %v2665 = vunpack.c.l.b16 %v2626
      %v2666 = vunpack.c.l.b16 %v2627
      %v2667 = vunpack.c.l.b16 %v2628
      %v2668 = vunpack.c.l.b16 %v2629
      %v2669 = vpack.c.b16 %v2654, %v2653
      %v2670 = vpack.c.b16 %v2656, %v2655
      %v2671 = vpack.c.b16 %v2658, %v2657
      %v2672 = vpack.c.b16 %v2660, %v2659
      %v2673 = vpack.c.b16 %v2662, %v2661
      %v2674 = vpack.c.b16 %v2664, %v2663
      %v2675 = vpack.c.b16 %v2666, %v2665
      %v2676 = vpack.c.b16 %v2668, %v2667
      %2685 = vmatprep.subr.bf16.mxu0 0
      %2686 = vmatpush1.bf16.msra.mxu0 %v2669
      %2687 = vmatprep.subr.bf16.mxu0 0
      %2688 = vmatpush1.bf16.msra.mxu0 %v2670
      %2689 = vmatprep.subr.bf16.mxu0 0
      %2690 = vmatpush1.bf16.msra.mxu0 %v2671
      %2691 = vmatprep.subr.bf16.mxu0 0
      %2692 = vmatpush1.bf16.msra.mxu0 %v2672
      %2693 = vmatprep.subr.bf16.mxu0 0
      %2694 = vmatpush1.bf16.msra.mxu0 %v2673
      %2695 = vmatprep.subr.bf16.mxu0 0
      %2696 = vmatpush1.bf16.msra.mxu0 %v2674
      %2697 = vmatprep.subr.bf16.mxu0 0
      %2698 = vmatpush1.bf16.msra.mxu0 %v2675
      %2699 = vmatprep.subr.bf16.mxu0 0
      %2700 = vmatpush1.bf16.msra.mxu0 %v2676
      %2701 = vmatprep.subr.bf16.mxu0 0
      %2702 = vmatpush1.bf16.msra.mxu0 0
      %2703 = vmatprep.subr.bf16.mxu0 0
      %2704 = vmatpush1.bf16.msra.mxu0 0
      %2705 = vmatprep.subr.bf16.mxu0 0
      %2706 = vmatpush1.bf16.msra.mxu0 0
      %2707 = vmatprep.subr.bf16.mxu0 0
      %2708 = vmatpush1.bf16.msra.mxu0 0
      %2709 = vmatprep.subr.bf16.mxu0 0
      %2710 = vmatpush1.bf16.msra.mxu0 0
      %2711 = vmatprep.subr.bf16.mxu0 0
      %2712 = vmatpush1.bf16.msra.mxu0 0
      %2713 = vmatprep.subr.bf16.mxu0 0
      %2714 = vmatpush1.bf16.msra.mxu0 0
      %2715 = vmatprep.subr.bf16.mxu0 0
      %2716 = vmatpush1.bf16.msra.mxu0 0
      %2717 = vmatprep.mubr.bf16.mxu0 0
      %2718 = vmatmul.mubr.bf16.gmra.mrb[0].mxu0 %v2598
      %v2719 = vpop.f32.mrb[0].mxu0
      %v2720 = vadd.f32 %v2635, %v2719
      %v2721 = vpop.f32.mrb[0].mxu0
      %v2722 = vpop.f32.mrb[0].mxu0
      %v2723 = vadd.f32 %v2635, %v2722
      %v2724 = vpop.f32.mrb[0].mxu0
      %2725 = vmatprep.mubr.bf16.mxu0 0
      %2726 = vmatmul.mubr.bf16.gmra.mrb[0].mxu0 %v2599
      %v2727 = vpop.f32.mrb[0].mxu0
      %v2728 = vadd.f32 %v2635, %v2727
      %v2729 = vpop.f32.mrb[0].mxu0
      %v2730 = vpop.f32.mrb[0].mxu0
      %v2731 = vadd.f32 %v2635, %v2730
      %v2732 = vpop.f32.mrb[0].mxu0
      %2733 = vmatprep.mubr.bf16.mxu0 0
      %2734 = vmatmul.mubr.bf16.gmra.mrb[0].mxu0 %v2600
      %v2735 = vpop.f32.mrb[0].mxu0
      %v2736 = vadd.f32 %v2635, %v2735
      %v2737 = vpop.f32.mrb[0].mxu0
      %v2738 = vpop.f32.mrb[0].mxu0
      %v2739 = vadd.f32 %v2635, %v2738
      %v2740 = vpop.f32.mrb[0].mxu0
      %2741 = vmatprep.mubr.bf16.mxu0 0
      %2742 = vmatmul.mubr.bf16.gmra.mrb[0].mxu0 %v2601
      %v2743 = vpop.f32.mrb[0].mxu0
      %v2744 = vadd.f32 %v2635, %v2743
      %v2745 = vpop.f32.mrb[0].mxu0
      %v2746 = vpop.f32.mrb[0].mxu0
      %v2747 = vadd.f32 %v2635, %v2746
      %v2748 = vpop.f32.mrb[0].mxu0
      %2749 = vmatprep.mubr.bf16.mxu0 0
      %2750 = vmatmul.mubr.bf16.gmra.mrb[0].mxu0 %v2602
      %v2751 = vpop.f32.mrb[0].mxu0
      %v2752 = vadd.f32 %v2635, %v2751
      %v2753 = vpop.f32.mrb[0].mxu0
      %v2754 = vpop.f32.mrb[0].mxu0
      %v2755 = vadd.f32 %v2635, %v2754
      %v2756 = vpop.f32.mrb[0].mxu0
      %2757 = vmatprep.mubr.bf16.mxu0 0
      %2758 = vmatmul.mubr.bf16.gmra.mrb[0].mxu0 %v2603
      %v2759 = vpop.f32.mrb[0].mxu0
      %v2760 = vadd.f32 %v2635, %v2759
      %v2761 = vpop.f32.mrb[0].mxu0
      %v2762 = vpop.f32.mrb[0].mxu0
      %v2763 = vadd.f32 %v2635, %v2762
      %v2764 = vpop.f32.mrb[0].mxu0
      %2765 = vmatprep.mubr.bf16.mxu0 0
      %2766 = vmatmul.mubr.bf16.gmra.mrb[0].mxu0 %v2604
      %v2767 = vpop.f32.mrb[0].mxu0
      %v2768 = vadd.f32 %v2635, %v2767
      %v2769 = vpop.f32.mrb[0].mxu0
      %v2770 = vpop.f32.mrb[0].mxu0
      %v2771 = vadd.f32 %v2635, %v2770
      %v2772 = vpop.f32.mrb[0].mxu0
      %2773 = vmatprep.mubr.bf16.mxu0 0
      %2774 = vmatmul.mubr.bf16.gmra.mrb[0].mxu0 %v2605
      %v2775 = vpop.f32.mrb[0].mxu0
      %v2776 = vadd.f32 %v2635, %v2775
      %v2777 = vpop.f32.mrb[0].mxu0
      %v2778 = vpop.f32.mrb[0].mxu0
      %v2779 = vadd.f32 %v2635, %v2778
      %v2780 = vpop.f32.mrb[0].mxu0
      %2781 = vmatprep.mubr.bf16.mxu0 0
      %2782 = vmatmul.mubr.bf16.gmra.mrb[0].mxu0 %v2606
      %v2783 = vpop.f32.mrb[0].mxu0
      %v2784 = vadd.f32 %v2635, %v2783
      %v2785 = vpop.f32.mrb[0].mxu0
      %v2786 = vpop.f32.mrb[0].mxu0
      %v2787 = vadd.f32 %v2635, %v2786
      %v2788 = vpop.f32.mrb[0].mxu0
      %2789 = vmatprep.mubr.bf16.mxu0 0
      %2790 = vmatmul.mubr.bf16.gmra.mrb[0].mxu0 %v2607
      %v2791 = vpop.f32.mrb[0].mxu0
      %v2792 = vadd.f32 %v2635, %v2791
      %v2793 = vpop.f32.mrb[0].mxu0
      %v2794 = vpop.f32.mrb[0].mxu0
      %v2795 = vadd.f32 %v2635, %v2794
      %v2796 = vpop.f32.mrb[0].mxu0
      %2797 = vmatprep.mubr.bf16.mxu0 0
      %2798 = vmatmul.mubr.bf16.gmra.mrb[0].mxu0 %v2608
      %v2799 = vpop.f32.mrb[0].mxu0
      %v2800 = vadd.f32 %v2635, %v2799
      %v2801 = vpop.f32.mrb[0].mxu0
      %v2802 = vpop.f32.mrb[0].mxu0
      %v2803 = vadd.f32 %v2635, %v2802
      %v2804 = vpop.f32.mrb[0].mxu0
      %2805 = vmatprep.mubr.bf16.mxu0 0
      %2806 = vmatmul.mubr.bf16.gmra.mrb[0].mxu0 %v2609
      %v2807 = vpop.f32.mrb[0].mxu0
      %v2808 = vadd.f32 %v2635, %v2807
      %v2809 = vpop.f32.mrb[0].mxu0
      %v2810 = vpop.f32.mrb[0].mxu0
      %v2811 = vadd.f32 %v2635, %v2810
      %v2812 = vpop.f32.mrb[0].mxu0
      %2813 = vmatprep.mubr.bf16.mxu0 0
      %2814 = vmatmul.mubr.bf16.gmra.mrb[0].mxu0 %v2610
      %v2815 = vpop.f32.mrb[0].mxu0
      %v2816 = vadd.f32 %v2635, %v2815
      %v2817 = vpop.f32.mrb[0].mxu0
      %v2818 = vpop.f32.mrb[0].mxu0
      %v2819 = vadd.f32 %v2635, %v2818
      %v2820 = vpop.f32.mrb[0].mxu0
      %2821 = vmatprep.mubr.bf16.mxu0 0
      %2822 = vmatmul.mubr.bf16.gmra.mrb[0].mxu0 %v2611
      %v2823 = vpop.f32.mrb[0].mxu0
      %v2824 = vadd.f32 %v2635, %v2823
      %v2825 = vpop.f32.mrb[0].mxu0
      %v2826 = vpop.f32.mrb[0].mxu0
      %v2827 = vadd.f32 %v2635, %v2826
      %v2828 = vpop.f32.mrb[0].mxu0
      %2829 = vmatprep.mubr.bf16.mxu0 0
      %2830 = vmatmul.mubr.bf16.gmra.mrb[0].mxu0 %v2612
      %v2831 = vpop.f32.mrb[0].mxu0
      %v2832 = vadd.f32 %v2635, %v2831
      %v2833 = vpop.f32.mrb[0].mxu0
      %v2834 = vpop.f32.mrb[0].mxu0
      %v2835 = vadd.f32 %v2635, %v2834
      %v2836 = vpop.f32.mrb[0].mxu0
      %2837 = vmatprep.mubr.bf16.mxu0 0
      %2838 = vmatmul.mubr.bf16.gmra.mrb[0].mxu0 %v2613
      %v2839 = vpop.f32.mrb[0].mxu0
      %v2840 = vadd.f32 %v2635, %v2839
      %v2841 = vpop.f32.mrb[0].mxu0
      %v2842 = vpop.f32.mrb[0].mxu0
      %v2843 = vadd.f32 %v2635, %v2842
      %v2844 = vpop.f32.mrb[0].mxu0
      %2845 = vdwg.mxu0
      %v2846 = vmax.f32 %v2720, 0.0
      %v2847 = vmax.f32 %v2723, 0.0
      %v2848 = vmax.f32 %v2728, 0.0
      %v2849 = vmax.f32 %v2731, 0.0
      %v2850 = vmax.f32 %v2736, 0.0
      %v2851 = vmax.f32 %v2739, 0.0
      %v2852 = vmax.f32 %v2744, 0.0
      %v2853 = vmax.f32 %v2747, 0.0
      %v2854 = vmax.f32 %v2752, 0.0
      %v2855 = vmax.f32 %v2755, 0.0
      %v2856 = vmax.f32 %v2760, 0.0
      %v2857 = vmax.f32 %v2763, 0.0
      %v2858 = vmax.f32 %v2768, 0.0
      %v2859 = vmax.f32 %v2771, 0.0
      %v2860 = vmax.f32 %v2776, 0.0
      %v2861 = vmax.f32 %v2779, 0.0
      %v2862 = vmax.f32 %v2784, 0.0
      %v2863 = vmax.f32 %v2787, 0.0
      %v2864 = vmax.f32 %v2792, 0.0
      %v2865 = vmax.f32 %v2795, 0.0
      %v2866 = vmax.f32 %v2800, 0.0
      %v2867 = vmax.f32 %v2803, 0.0
      %v2868 = vmax.f32 %v2808, 0.0
      %v2869 = vmax.f32 %v2811, 0.0
      %v2870 = vmax.f32 %v2816, 0.0
      %v2871 = vmax.f32 %v2819, 0.0
      %v2872 = vmax.f32 %v2824, 0.0
      %v2873 = vmax.f32 %v2827, 0.0
      %v2874 = vmax.f32 %v2832, 0.0
      %v2875 = vmax.f32 %v2835, 0.0
      %v2876 = vmax.f32 %v2840, 0.0
      %v2877 = vmax.f32 %v2843, 0.0
      %v2878 = vpack.c.bf16 %v2847, %v2846
      %v2879 = vpack.c.bf16 %v2849, %v2848
      %v2880 = vpack.c.bf16 %v2851, %v2850
      %v2881 = vpack.c.bf16 %v2853, %v2852
      %v2882 = vpack.c.bf16 %v2855, %v2854
      %v2883 = vpack.c.bf16 %v2857, %v2856
      %v2884 = vpack.c.bf16 %v2859, %v2858
      %v2885 = vpack.c.bf16 %v2861, %v2860
      %v2886 = vpack.c.bf16 %v2863, %v2862
      %v2887 = vpack.c.bf16 %v2865, %v2864
      %v2888 = vpack.c.bf16 %v2867, %v2866
      %v2889 = vpack.c.bf16 %v2869, %v2868
      %v2890 = vpack.c.bf16 %v2871, %v2870
      %v2891 = vpack.c.bf16 %v2873, %v2872
      %v2892 = vpack.c.bf16 %v2875, %v2874
      %v2893 = vpack.c.bf16 %v2877, %v2876
      %v2894 = vld [vmem:[%s13] sm:$0x1]
      %v2895 = vld [vmem:[#allocation2] sm:$0x1]
      %2897 = vset.pattern.permute.xlu0 0
      %2898 = vperm.xlu0 %2897, %v2895
      %v2899 = vpop.permute.xlu0 %2898
      %v2901 = vlaneseq
      %v2902 = vshrl.u32 %v2901, 7
      %v2903 = vsub.s32 0, %v2902
      %v2904 = vrot.slane %v2899, %v2903
      %2905 = vmatprep.subr.bf16.mxu0 0
      %2906 = vmatpush1.bf16.xpose.msra.mxu0 %v2878
      %2907 = vmatprep.subr.bf16.mxu0 0
      %2908 = vmatpush1.bf16.xpose.msra.mxu0 %v2879
      %2909 = vmatprep.subr.bf16.mxu0 0
      %2910 = vmatpush1.bf16.xpose.msra.mxu0 %v2880
      %2911 = vmatprep.subr.bf16.mxu0 0
      %2912 = vmatpush1.bf16.xpose.msra.mxu0 %v2881
      %2913 = vmatprep.subr.bf16.mxu0 0
      %2914 = vmatpush1.bf16.xpose.msra.mxu0 %v2882
      %2915 = vmatprep.subr.bf16.mxu0 0
      %2916 = vmatpush1.bf16.xpose.msra.mxu0 %v2883
      %2917 = vmatprep.subr.bf16.mxu0 0
      %2918 = vmatpush1.bf16.xpose.msra.mxu0 %v2884
      %2919 = vmatprep.subr.bf16.mxu0 0
      %2920 = vmatpush1.bf16.xpose.msra.mxu0 %v2885
      %2921 = vmatprep.subr.bf16.mxu0 0
      %2922 = vmatpush1.bf16.xpose.msra.mxu0 %v2886
      %2923 = vmatprep.subr.bf16.mxu0 0
      %2924 = vmatpush1.bf16.xpose.msra.mxu0 %v2887
      %2925 = vmatprep.subr.bf16.mxu0 0
      %2926 = vmatpush1.bf16.xpose.msra.mxu0 %v2888
      %2927 = vmatprep.subr.bf16.mxu0 0
      %2928 = vmatpush1.bf16.xpose.msra.mxu0 %v2889
      %2929 = vmatprep.subr.bf16.mxu0 0
      %2930 = vmatpush1.bf16.xpose.msra.mxu0 %v2890
      %2931 = vmatprep.subr.bf16.mxu0 0
      %2932 = vmatpush1.bf16.xpose.msra.mxu0 %v2891
      %2933 = vmatprep.subr.bf16.mxu0 0
      %2934 = vmatpush1.bf16.xpose.msra.mxu0 %v2892
      %2935 = vmatprep.subr.bf16.mxu0 0
      %2936 = vmatpush1.bf16.xpose.msra.mxu0 %v2893
      %2937 = vmatprep.mubr.bf16.mxu0 0
      %2938 = vmatmul.mubr.bf16.gmra.mrb[0].mxu0 %v2894
      %v2939 = vpop.f32.mrb[0].mxu0
      %v2940 = vadd.f32 %v2904, %v2939
      %v2941 = vpop.f32.mrb[0].mxu0
      %v2942 = vadd.f32 %v2904, %v2941
      %v2943 = vpop.f32.mrb[0].mxu0
      %v2944 = vpop.f32.mrb[0].mxu0
      %2945 = vdwg.mxu0
      %v2948 = vcombine.low %v2940, %v2942
      %v2950 = vunpack.c.l.s4 1966171168
      %v2951 = vunpack.c.0.s8 %v2950
      %v2952 = vlaneseq
      %v2953 = vshrl.u32 %v2952, 7
      %v2954 = vsub.s32 %v2951, %v2953
      %v2955 = vrot.slane %v2948, %v2954
      %v2957 = vunpack.c.l.s4 1966171168
      %v2958 = vunpack.c.0.s8 %v2957
      %v2959 = vlaneseq
      %v2960 = vshrl.u32 %v2959, 7
      %v2961 = vsub.s32 %v2958, %v2960
      %v2962 = vrot.slane %v2955, %v2961
      %v2964 = vlaneseq
      %vm2965 = vcmp.ge.s32.totalorder %v2964, 0
      %vm2966 = vcmp.lt.s32.totalorder %v2964, 256
      %vm2967 = vmand %vm2965, %vm2966
      %2968 = vst.msk [vmem:[%s518] sm:$0x3] %vm2967, %v2962
      %s2969 = smul.u32 2, %s28
      %p2970 = scmp.lt.s32.totalorder %s2969, 3
      %s2971 = scalar_select %p2970, %s2969, 3
      %s2972 = scalar_lea.vmem %s15, %s2971
      // Predicated region
      $region81: #{_lambda_.1} parent=79 // pred_check
        %p2973 = pneg %p371
      $region82: #{_lambda_.1} parent=79 // pred_check_branch
        %2975 = sbr.rel (%p2973) target = $region84
      $region83: #{_lambda_.1} parent=79 // pred_region
        %s2976 = smul.u32 2, %s28
      $region84: #{_lambda_.1} parent=79 // pred_fallthru
        _
    $region80: #{_lambda_.1} parent=5 // pred_fallthru
      _
    %p2977 = scmp.le.s32.totalorder 2, %s23
    // Predicated region
    $region85: #{_lambda_.1} parent=5 // pred_check
      %p2978 = pneg %p2977
    $region86: #{_lambda_.1} parent=5 // pred_check_branch
      %2980 = sbr.rel (%p2978) target = $region88
    $region87: #{_lambda_.1} parent=5 // pred_region
      %s2981 = ssub.s32 %s23, 2
      // Predicated region
      $region89: #{_lambda_.1} parent=87 // pred_check
        %p2982 = pneg %p377
      $region90: #{_lambda_.1} parent=87 // pred_check_branch
        %2984 = sbr.rel (%p2982) target = $region92
      $region91: #{_lambda_.1} parent=87 // pred_region
        %s2985 = smul.u32 2, %s29
        %p2986 = scmp.lt.s32.totalorder %s2985, 3
        %s2987 = scalar_select %p2986, %s2985, 3
        %s2988 = scalar_lea.vmem %s15, %s2987
      $region92: #{_lambda_.1} parent=87 // pred_fallthru
        _
    $region88: #{_lambda_.1} parent=5 // pred_fallthru
      _
  $region6: #{_lambda_.1} parent=0 // loop_footer
    %s27 = sadd.s32 1, %s23
  $region7: #{_lambda_.1} parent=0 // loop_footer_branch
    %22 = sbr.rel target = $region3
  $region8: #{_lambda_.1} parent=0 // loop_exit
    _

</llo_original>
